<compile_context>
chip_gen: v6e
topology: v6e:2x2x1
jax: 0.10.0
libtpu: 0.0.40
codegen_flags: <defaults>
</compile_context>

<pallas_src>
import functools
import math

import numpy as np
import jax
import jax.numpy as jnp
from jax import lax
from jax.experimental import pallas as pl
from jax.experimental.pallas import tpu as pltpu

_INV_SQRT2 = 1.0 / math.sqrt(2.0)
_VMEM_LIMIT_BYTES = 48 * 1024 * 1024     # < v7x 64 MiB physical; raises v5e 16 MiB default
_TILE_BYTE_BUDGET = 10 * 1024 * 1024     # double-buffered working-set budget per kernel


def _erf_poly(x):
    # Abramowitz & Stegun 7.1.26 erf polynomial (max abs err ~1.5e-7): keeps the
    # exact (erf-based) torch.nn.GELU semantics using only exp / select / VALU ops.
    a1, a2, a3, a4, a5 = 0.254829592, -0.284496736, 1.421413741, -1.453152027, 1.061405429
    p = 0.3275911
    sign = jnp.where(x >= 0.0, 1.0, -1.0)
    ax = jnp.abs(x)
    t = 1.0 / (1.0 + p * ax)
    poly = ((((a5 * t + a4) * t + a3) * t + a2) * t + a1) * t
    return sign * (1.0 - poly * jnp.exp(-ax * ax))


def _gelu_exact(x):
    return 0.5 * x * (1.0 + _erf_poly(x * _INV_SQRT2))


def _pick_tile(n, align, unit_bytes, byte_budget, target_cap=None):
    """Largest divisor of n that is a multiple of `align`, whose double-buffered
    working set (unit_bytes per tile unit) fits `byte_budget`, stays under
    `target_cap`, and - when possible - leaves >= 2 grid steps so both v7x
    TensorCores get work.  Falls back to n (full-extent block) when n has no
    aligned divisor (full-extent blocks satisfy the (8,128) rule)."""
    if n % align != 0:
        return n
    divs = [d for d in range(align, n + 1, align) if n % d == 0]
    cap = max(align, byte_budget // max(int(unit_bytes), 1))
    if target_cap is not None:
        cap = min(cap, target_cap)
    fit = [d for d in divs if d <= cap] or divs[:1]
    tile = max(fit)
    if tile == n:
        smaller = [d for d in fit if d < n]
        if smaller:
            tile = max(smaller)      # >= 2 grid steps for megacore sharding
    return tile


# -----------------------------------------------------------------------------------
# Kernel 1: SpectralConv1d_cond complex mode mixing (incl. FreqLinear conditioning).
# Grid over mode tiles; mode-batched bf16 MXU matmuls with f32 accumulation.
# -----------------------------------------------------------------------------------
def _spectral_kernel(embT_ref, fwr_ref, fwi_ref, fbr_ref, fbi_ref,
                     xr_ref, xi_ref, wr_ref, wi_ref, or_ref, oi_ref):
    # embT:    (Cc, B)      conditioning embedding, transposed (f32)
    # fwr/fwi: (TM, Cc)     FreqLinear weights (re/im de-interleaved, transposed, f32)
    # fbr/fbi: (TM, 1)      FreqLinear bias (f32)
    # xr/xi:   (TM, B, Ci)  truncated rfft(x), modes-major layout (bf16)
    # wr/wi:   (TM, Ci, Co) spectral weights, modes-major layout (bf16)
    # or/oi:   (TM, B, Co)  outputs (f32)
    embT = embT_ref[...]
    # FreqLinear computed once per mode tile (not per batch element).
    er = jnp.dot(fwr_ref[...], embT, preferred_element_type=jnp.float32) + fbr_ref[...]
    ei = jnp.dot(fwi_ref[...], embT, preferred_element_type=jnp.float32) + fbi_ref[...]

    # Mode-batched complex matmul on the MXU: contract Ci, batch over modes.
    # bf16 operands, f32 accumulation (validated against the f32 reference).
    dn = (((2,), (1,)), ((0,), (0,)))
    xr = xr_ref[...]
    xi = xi_ref[...]
    wr = wr_ref[...]
    wi = wi_ref[...]
    rr = lax.dot_general(xr, wr, dn, preferred_element_type=jnp.float32)
    ii = lax.dot_general(xi, wi, dn, preferred_element_type=jnp.float32)
    ri = lax.dot_general(xr, wi, dn, preferred_element_type=jnp.float32)
    ir = lax.dot_general(xi, wr, dn, preferred_element_type=jnp.float32)
    raw_r = rr - ii
    raw_i = ri + ir

    # Conditioning commutes with the channel contraction; apply it to the smaller
    # (TM, B, Co) output instead of to every input channel.
    er3 = er[:, :, None]
    ei3 = ei[:, :, None]
    or_ref[...] = raw_r * er3 - raw_i * ei3
    oi_ref[...] = raw_r * ei3 + raw_i * er3


def _spectral_modes_pallas(embT, fwr_t, fwi_t, fbr_t, fbi_t, xr_t, xi_t, wr_t, wi_t):
    M, B, Ci = xr_t.shape
    Co = wr_t.shape[2]
    Cc = embT.shape[0]
    # Double-buffered bytes per mode: bf16 weights + bf16 activations + f32 outputs.
    unit = (4 * Ci * Co * 2      # wr + wi, 2 pipeline buffers each, bf16
            + 4 * B * Ci * 2     # xr + xi
            + 4 * B * Co * 4     # or + oi (f32)
            + 4 * Cc * 4 + 64)   # FreqLinear weights / bias
    tm = _pick_tile(M, 8, unit, _TILE_BYTE_BUDGET)
    grid = (M // tm,)
    in_specs = [
        pl.BlockSpec((Cc, B), lambda m: (0, 0)),
        pl.BlockSpec((tm, Cc), lambda m: (m, 0)),
        pl.BlockSpec((tm, Cc), lambda m: (m, 0)),
        pl.BlockSpec((tm, 1), lambda m: (m, 0)),
        pl.BlockSpec((tm, 1), lambda m: (m, 0)),
        pl.BlockSpec((tm, B, Ci), lambda m: (m, 0, 0)),
        pl.BlockSpec((tm, B, Ci), lambda m: (m, 0, 0)),
        pl.BlockSpec((tm, Ci, Co), lambda m: (m, 0, 0)),
        pl.BlockSpec((tm, Ci, Co), lambda m: (m, 0, 0)),
    ]
    out_specs = (
        pl.BlockSpec((tm, B, Co), lambda m: (m, 0, 0)),
        pl.BlockSpec((tm, B, Co), lambda m: (m, 0, 0)),
    )
    out_shape = (
        jax.ShapeDtypeStruct((M, B, Co), jnp.float32),
        jax.ShapeDtypeStruct((M, B, Co), jnp.float32),
    )
    return pl.pallas_call(
        _spectral_kernel,
        grid=grid,
        in_specs=in_specs,
        out_specs=out_specs,
        out_shape=out_shape,
        compiler_params=pltpu.CompilerParams(
            dimension_semantics=("parallel",),
            vmem_limit_bytes=_VMEM_LIMIT_BYTES),
    )(embT, fwr_t, fwi_t, fbr_t, fbi_t, xr_t, xi_t, wr_t, wi_t)


# -----------------------------------------------------------------------------------
# Kernel 2: 1x1 conv (channel matmul) + spectral branch + fused bias + GELU on a
# lane-dense (C, B*X) slab.  Grid over 128-aligned lane tiles (or the full slab).
# -----------------------------------------------------------------------------------
def _mix_kernel(x_ref, x1_ref, cw_ref, bias_ref, *out_refs, spatial):
    # x:    (Ci, LW)  bf16 1x1-conv input slab (batch folded into lanes: L = B*X)
    # x1:   (Co, LW)  f32 spectral-branch slab (already inverse-FFT'd; no cast pass)
    # cw:   (Co, Ci)  bf16 conv1x1 weight
    # bias: (Co, B)   f32 fused conv bias + conditioning bias, per (channel, batch)
    # out:  (Co, LW)  f32 result [+ optional bf16 copy for the next stage's conv]
    lw = x_ref.shape[1]
    nb = bias_ref.shape[1]

    # One wide bf16 MXU matmul (f32 accumulation) instead of a per-batch grid.
    conv = jnp.dot(cw_ref[...], x_ref[...], preferred_element_type=jnp.float32)

    # Expand the (Co, B) bias across the flattened lanes with a tiny 0/1-selection
    # matmul: lane l of this tile belongs to batch (tile_offset + l) // spatial.
    base = pl.program_id(0) * lw
    lane = lax.broadcasted_iota(jnp.int32, (nb, lw), 1) + base
    row = lax.broadcasted_iota(jnp.int32, (nb, lw), 0)
    onehot = jnp.logical_and(lane >= row * spatial,
                             lane < (row + 1) * spatial).astype(jnp.float32)
    bias_full = jnp.dot(bias_ref[...], onehot, preferred_element_type=jnp.float32)

    y = _gelu_exact(x1_ref[...] + conv + bias_full)
    out_refs[0][...] = y
    if len(out_refs) == 2:
        out_refs[1][...] = y.astype(jnp.bfloat16)


def _conv_mix_gelu_pallas(x_flat_bf, x1_flat, cw_bf, bias_cb, spatial, emit_bf16=False):
    Ci, L = x_flat_bf.shape
    Co = cw_bf.shape[0]
    B = bias_cb.shape[1]
    # Double-buffered bytes per lane: bf16 x slab, f32 x1 slab, f32 (+bf16) outputs
    # plus a rough allowance for the GELU-polynomial f32 temporaries.
    unit = (2 * Ci * 2 + 2 * Co * 4 + 2 * Co * 4 + (2 * Co * 2 if emit_bf16 else 0)
            + 6 * Co * 4 + 2 * B * 4)
    lw = _pick_tile(L, 128, unit, _TILE_BYTE_BUDGET, target_cap=4096)
    grid = (L // lw,)
    in_specs = [
        pl.BlockSpec((Ci, lw), lambda i: (0, i)),
        pl.BlockSpec((Co, lw), lambda i: (0, i)),
        pl.BlockSpec((Co, Ci), lambda i: (0, 0)),
        pl.BlockSpec((Co, B), lambda i: (0, 0)),
    ]
    if emit_bf16:
        out_specs = (pl.BlockSpec((Co, lw), lambda i: (0, i)),
                     pl.BlockSpec((Co, lw), lambda i: (0, i)))
        out_shape = (jax.ShapeDtypeStruct((Co, L), jnp.float32),
                     jax.ShapeDtypeStruct((Co, L), jnp.bfloat16))
    else:
        out_specs = pl.BlockSpec((Co, lw), lambda i: (0, i))
        out_shape = jax.ShapeDtypeStruct((Co, L), jnp.float32)
    return pl.pallas_call(
        functools.partial(_mix_kernel, spatial=spatial),
        grid=grid,
        in_specs=in_specs,
        out_specs=out_specs,
        out_shape=out_shape,
        compiler_params=pltpu.CompilerParams(
            dimension_semantics=("parallel",),
            vmem_limit_bytes=_VMEM_LIMIT_BYTES),
    )(x_flat_bf, x1_flat, cw_bf, bias_cb)


# -----------------------------------------------------------------------------------
# SpectralConv1d_cond wrapper (channel-major in/out; FFT glue around the kernel).
# -----------------------------------------------------------------------------------
def spectral_conv1d_cond_cm(x_cm, embT, wr_t, wi_t, fwr_t, fwi_t, fbr_t, fbi_t, modes):
    """x_cm: (Ci, B, X) channel-major.  Returns (Co, B, X) channel-major f32."""
    Ci, B, X = x_cm.shape
    Co = wr_t.shape[2]
    # TODO(synk): rfft / irfft have no Pallas TPU primitive; they stay in plain JAX.
    x_ft = jnp.fft.rfft(x_cm.astype(jnp.float32), axis=-1)          # (Ci, B, nf)
    xm = x_ft[:, :, :modes]
    # Mode-major layout for the kernel: only a small (Ci*B*modes) tensor is moved;
    # the bf16 cast fuses into this small transpose.
    xr_t = jnp.real(xm).transpose(2, 1, 0).astype(jnp.bfloat16)     # (M, B, Ci)
    xi_t = jnp.imag(xm).transpose(2, 1, 0).astype(jnp.bfloat16)

    or_t, oi_t = _spectral_modes_pallas(embT, fwr_t, fwi_t, fbr_t, fbi_t,
                                        xr_t, xi_t, wr_t, wi_t)
    # Build out_ft channel-major so irfft returns (Co, B, X) and the downstream
    # flatten is a pure reshape (no full-tensor transpose pass).
    out_modes = (or_t + 1j * oi_t).transpose(2, 1, 0)                # (Co, B, M)
    n_freq = X // 2 + 1
    out_ft = jnp.zeros((Co, B, n_freq), jnp.complex64).at[:, :, :modes].set(out_modes)
    return jnp.fft.irfft(out_ft, n=X, axis=-1).astype(jnp.float32)   # (Co, B, X)


# -----------------------------------------------------------------------------------
# FourierBasicBlock forward.
# -----------------------------------------------------------------------------------
def fourier_basic_block(params, x, emb):
    modes = params["modes1"]
    B, Ci, X = x.shape
    Co = params["c1_w"].shape[0]
    L = B * X

    embT = emb.T                                                # (Cc, B)

    # cond_emb Linear is tiny (B x Cc x planes); fuse its output with the conv bias
    # so the mix kernel streams a single (Co, B) bias instead of two bias inputs.
    emb_out = emb @ params["ce_w"].T + params["ce_b"]           # (B, Co)
    bias1 = params["c1_b"][:, None] + emb_out.T                 # (Co, B)
    bias2 = jnp.broadcast_to(params["c2_b"][:, None], (Co, B))  # (Co, B)

    # Single layout change at the input boundary; activations stay channel-major
    # (C, B, X) between the two stages (no inter-kernel transpose passes).
    x_cm = x.transpose(1, 0, 2)                                 # (Ci, B, X)
    x_flat_bf = x_cm.reshape(Ci, L).astype(jnp.bfloat16)        # cast fuses with transpose

    # stage 1: GELU(fourier1(x, emb) + conv1(x) + cond_emb(emb))
    x1_cm = spectral_conv1d_cond_cm(x_cm, embT,
                                    params["f1_wr_t"], params["f1_wi_t"],
                                    params["f1_fwr_t"], params["f1_fwi_t"],
                                    params["f1_fbr_t"], params["f1_fbi_t"], modes)
    x1_flat = x1_cm.reshape(Co, L)                              # pure reshape, stays f32
    out_flat, out_flat_bf = _conv_mix_gelu_pallas(
        x_flat_bf, x1_flat, params["c1_w_bf"], bias1, X, emit_bf16=True)

    # stage 2: GELU(fourier2(out, emb) + conv2(out)) (channel-major throughout)
    out_cm = out_flat.reshape(Co, B, X)
    x1_cm = spectral_conv1d_cond_cm(out_cm, embT,
                                    params["f2_wr_t"], params["f2_wi_t"],
                                    params["f2_fwr_t"], params["f2_fwi_t"],
                                    params["f2_fbr_t"], params["f2_fbi_t"], modes)
    x1_flat = x1_cm.reshape(Co, L)
    out_flat = _conv_mix_gelu_pallas(out_flat_bf, x1_flat, params["c2_w_bf"], bias2, X)

    # One transpose back to the PyTorch (B, C, X) layout at the output boundary.
    return out_flat.reshape(Co, B, X).transpose(1, 0, 2)


# -----------------------------------------------------------------------------------
# Deterministic parameter init (shapes match the PyTorch module __init__) plus
# kernel-friendly derived layouts computed once at init (no per-call gathers/casts).
# -----------------------------------------------------------------------------------
def _freq_deinterleave(fw, fb):
    # view_as_complex split: even columns = real, odd = imag; transpose once.
    return fw[:, 0::2].T, fw[:, 1::2].T, fb[:, 0::2].T, fb[:, 1::2].T


def _spectral_transpose(w_complex, dtype):
    # (Ci, Co, M) complex -> modes-major (M, Ci, Co) real / imag, stored in `dtype`.
    return (jnp.transpose(jnp.real(w_complex), (2, 0, 1)).astype(dtype),
            jnp.transpose(jnp.imag(w_complex), (2, 0, 1)).astype(dtype))


def init_params(key, in_planes, planes, cond_channels, modes1):
    ks = jax.random.split(key, 12)
    s1 = 1.0 / (in_planes * planes)
    s2 = 1.0 / (planes * planes)
    sf = 1.0 / (cond_channels + 2 * modes1)
    f1_w = s1 * (jax.random.uniform(ks[0], (in_planes, planes, modes1), jnp.float32)
                 + 1j * jax.random.uniform(ks[1], (in_planes, planes, modes1), jnp.float32))
    f2_w = s2 * (jax.random.uniform(ks[5], (planes, planes, modes1), jnp.float32)
                 + 1j * jax.random.uniform(ks[6], (planes, planes, modes1), jnp.float32))
    f1_fw = sf * jax.random.normal(ks[2], (cond_channels, 2 * modes1), jnp.float32)
    f1_fb = jnp.zeros((1, 2 * modes1), jnp.float32)
    f2_fw = sf * jax.random.normal(ks[7], (cond_channels, 2 * modes1), jnp.float32)
    f2_fb = jnp.zeros((1, 2 * modes1), jnp.float32)

    p = dict(
        modes1=modes1,
        f1_w=f1_w, f1_fw=f1_fw, f1_fb=f1_fb,
        c1_w=0.1 * jax.random.normal(ks[3], (planes, in_planes), jnp.float32),
        c1_b=0.1 * jax.random.normal(ks[4], (planes,), jnp.float32),
        f2_w=f2_w, f2_fw=f2_fw, f2_fb=f2_fb,
        c2_w=0.1 * jax.random.normal(ks[8], (planes, planes), jnp.float32),
        c2_b=0.1 * jax.random.normal(ks[9], (planes,), jnp.float32),
        ce_w=0.1 * jax.random.normal(ks[10], (planes, cond_channels), jnp.float32),
        ce_b=0.1 * jax.random.normal(ks[11], (planes,), jnp.float32),
    )
    # bf16 streaming copies (halve the dominant HBM byte streams; f32 accumulation).
    p["f1_wr_t"], p["f1_wi_t"] = _spectral_transpose(f1_w, jnp.bfloat16)
    p["f2_wr_t"], p["f2_wi_t"] = _spectral_transpose(f2_w, jnp.bfloat16)
    p["c1_w_bf"] = p["c1_w"].astype(jnp.bfloat16)
    p["c2_w_bf"] = p["c2_w"].astype(jnp.bfloat16)
    # FreqLinear params are tiny; keep f32 (complex conditioning is precision-sensitive).
    p["f1_fwr_t"], p["f1_fwi_t"], p["f1_fbr_t"], p["f1_fbi_t"] = _freq_deinterleave(f1_fw, f1_fb)
    p["f2_fwr_t"], p["f2_fwi_t"], p["f2_fbr_t"], p["f2_fbi_t"] = _freq_deinterleave(f2_fw, f2_fb)
    return p


# -----------------------------------------------------------------------------------
# Pure-JAX reference (mirrors the PyTorch forward) for correctness checking.
# -----------------------------------------------------------------------------------
def reference_forward(params, x, emb):
    modes = params["modes1"]

    def gelu(v):
        return 0.5 * v * (1.0 + jax.lax.erf(v * _INV_SQRT2))

    def freq_linear(e, fw, fb):
        h = e @ fw + fb
        h = h.reshape(e.shape[0], modes, 2)
        return h[..., 0] + 1j * h[..., 1]

    def spectral(xin, e, w, fw, fb):
        emb_c = freq_linear(e, fw, fb)
        x_ft = jnp.fft.rfft(xin, axis=-1)
        inp = x_ft[:, :, :modes] * emb_c[:, None, :]
        out = jnp.einsum("bix,iox->box", inp, w)
        n_freq = xin.shape[-1] // 2 + 1
        out_ft = jnp.zeros((xin.shape[0], w.shape[1], n_freq), jnp.complex64)
        out_ft = out_ft.at[:, :, :modes].set(out)
        return jnp.fft.irfft(out_ft, n=xin.shape[-1], axis=-1)

    x1 = spectral(x, emb, params["f1_w"], params["f1_fw"], params["f1_fb"])
    x2 = jnp.einsum("oi,bix->box", params["c1_w"], x) + params["c1_b"][None, :, None]
    emb_out = emb @ params["ce_w"].T + params["ce_b"]
    out = gelu(x1 + x2 + emb_out[:, :, None])
    x1 = spectral(out, emb, params["f2_w"], params["f2_fw"], params["f2_fb"])
    x2 = jnp.einsum("oi,bix->box", params["c2_w"], out) + params["c2_b"][None, :, None]
    return gelu(x1 + x2)


if __name__ == "__main__":
    B, in_planes, planes, cond_channels, modes1, X = 2, 4, 8, 3, 16, 32
    key = jax.random.PRNGKey(0)
    kp, kx, ke = jax.random.split(key, 3)

    params = init_params(kp, in_planes, planes, cond_channels, modes1)
    x = jax.random.normal(kx, (B, in_planes, X), jnp.float32)
    emb = jax.random.normal(ke, (B, cond_channels), jnp.float32)

    out = fourier_basic_block(params, x, emb)
    out = jax.block_until_ready(out)

    ref = jax.block_until_ready(reference_forward(params, x, emb))
    assert out.shape == (B, planes, X)
    # Tolerance accounts for bf16 MXU operands in both the 1x1-conv path and the
    # spectral weight/activation streams (f32 accumulation everywhere).
    np.testing.assert_allclose(np.asarray(out), np.asarray(ref), rtol=1e-2, atol=1e-2)

    print("KERNEL_OK")
</pallas_src>

<mosaic_0001>
module attributes {stable_mosaic.version = 11 : i64} {
  func.func @_spectral_kernel(%arg0: i32, %arg1: memref<3x2xf32, #tpu.memory_space<vmem>>, %arg2: memref<8x3xf32, #tpu.memory_space<vmem>>, %arg3: memref<8x3xf32, #tpu.memory_space<vmem>>, %arg4: memref<8x1xf32, #tpu.memory_space<vmem>>, %arg5: memref<8x1xf32, #tpu.memory_space<vmem>>, %arg6: memref<8x2x4xbf16, #tpu.memory_space<vmem>>, %arg7: memref<8x2x4xbf16, #tpu.memory_space<vmem>>, %arg8: memref<8x4x8xbf16, #tpu.memory_space<vmem>>, %arg9: memref<8x4x8xbf16, #tpu.memory_space<vmem>>, %arg10: memref<8x2x8xf32, #tpu.memory_space<vmem>>, %arg11: memref<8x2x8xf32, #tpu.memory_space<vmem>>) attributes {dimension_semantics = [#tpu.dimension_semantics<parallel>], iteration_bounds = array<i64: 2>, scalar_prefetch = 0 : i64, scratch_operands = 0 : i64, tpu.core_type = #tpu.core_type<tc>, window_params = [{pipeline_mode = #tpu.pipeline_mode<synchronous>, transform_indices = @transform_0, window_bounds = array<i64: 3, 2>}, {transform_indices = @transform_1, window_bounds = array<i64: 8, 3>}, {transform_indices = @transform_2, window_bounds = array<i64: 8, 3>}, {transform_indices = @transform_3, window_bounds = array<i64: 8, 1>}, {transform_indices = @transform_4, window_bounds = array<i64: 8, 1>}, {transform_indices = @transform_5, window_bounds = array<i64: 8, 2, 4>}, {transform_indices = @transform_6, window_bounds = array<i64: 8, 2, 4>}, {transform_indices = @transform_7, window_bounds = array<i64: 8, 4, 8>}, {transform_indices = @transform_8, window_bounds = array<i64: 8, 4, 8>}, {transform_indices = @transform_9, window_bounds = array<i64: 8, 2, 8>}, {transform_indices = @transform_10, window_bounds = array<i64: 8, 2, 8>}]} {
    %c0 = arith.constant 0 : index
    %c0_0 = arith.constant 0 : index
    %0 = vector.load %arg1[%c0, %c0_0] : memref<3x2xf32, #tpu.memory_space<vmem>>, vector<3x2xf32>
    %c0_1 = arith.constant 0 : index
    %c0_2 = arith.constant 0 : index
    %1 = vector.load %arg2[%c0_1, %c0_2] : memref<8x3xf32, #tpu.memory_space<vmem>>, vector<8x3xf32>
    %cst = arith.constant dense<0.000000e+00> : vector<8x2xf32>
    %2 = tpu.matmul %1, %0, %cst {dimension_numbers = #tpu.dot_dimension_numbers<[1], [0], [0], [1], [0, 0, 1, 1], [], []>} : vector<8x3xf32>, vector<3x2xf32>, vector<8x2xf32> -> vector<8x2xf32>
    %c0_3 = arith.constant 0 : index
    %c0_4 = arith.constant 0 : index
    %3 = vector.load %arg4[%c0_3, %c0_4] : memref<8x1xf32, #tpu.memory_space<vmem>>, vector<8x1xf32>
    %4 = vector.broadcast %3 : vector<8x1xf32> to vector<8x2xf32>
    %5 = arith.addf %2, %4 : vector<8x2xf32>
    %c0_5 = arith.constant 0 : index
    %c0_6 = arith.constant 0 : index
    %6 = vector.load %arg3[%c0_5, %c0_6] : memref<8x3xf32, #tpu.memory_space<vmem>>, vector<8x3xf32>
    %cst_7 = arith.constant dense<0.000000e+00> : vector<8x2xf32>
    %7 = tpu.matmul %6, %0, %cst_7 {dimension_numbers = #tpu.dot_dimension_numbers<[1], [0], [0], [1], [0, 0, 1, 1], [], []>} : vector<8x3xf32>, vector<3x2xf32>, vector<8x2xf32> -> vector<8x2xf32>
    %c0_8 = arith.constant 0 : index
    %c0_9 = arith.constant 0 : index
    %8 = vector.load %arg5[%c0_8, %c0_9] : memref<8x1xf32, #tpu.memory_space<vmem>>, vector<8x1xf32>
    %9 = vector.broadcast %8 : vector<8x1xf32> to vector<8x2xf32>
    %10 = arith.addf %7, %9 : vector<8x2xf32>
    %c0_10 = arith.constant 0 : index
    %c0_11 = arith.constant 0 : index
    %c0_12 = arith.constant 0 : index
    %11 = vector.load %arg6[%c0_10, %c0_11, %c0_12] : memref<8x2x4xbf16, #tpu.memory_space<vmem>>, vector<8x2x4xbf16>
    %c0_13 = arith.constant 0 : index
    %c0_14 = arith.constant 0 : index
    %c0_15 = arith.constant 0 : index
    %12 = vector.load %arg7[%c0_13, %c0_14, %c0_15] : memref<8x2x4xbf16, #tpu.memory_space<vmem>>, vector<8x2x4xbf16>
    %c0_16 = arith.constant 0 : index
    %c0_17 = arith.constant 0 : index
    %c0_18 = arith.constant 0 : index
    %13 = vector.load %arg8[%c0_16, %c0_17, %c0_18] : memref<8x4x8xbf16, #tpu.memory_space<vmem>>, vector<8x4x8xbf16>
    %c0_19 = arith.constant 0 : index
    %c0_20 = arith.constant 0 : index
    %c0_21 = arith.constant 0 : index
    %14 = vector.load %arg9[%c0_19, %c0_20, %c0_21] : memref<8x4x8xbf16, #tpu.memory_space<vmem>>, vector<8x4x8xbf16>
    %cst_22 = arith.constant dense<0.000000e+00> : vector<8x2x8xf32>
    %15 = tpu.matmul %11, %13, %cst_22 {dimension_numbers = #tpu.dot_dimension_numbers<[2], [1], [1], [2], [0, 0, 0, 1, 1, 2], [0], [0]>} : vector<8x2x4xbf16>, vector<8x4x8xbf16>, vector<8x2x8xf32> -> vector<8x2x8xf32>
    %cst_23 = arith.constant dense<0.000000e+00> : vector<8x2x8xf32>
    %16 = tpu.matmul %12, %14, %cst_23 {dimension_numbers = #tpu.dot_dimension_numbers<[2], [1], [1], [2], [0, 0, 0, 1, 1, 2], [0], [0]>} : vector<8x2x4xbf16>, vector<8x4x8xbf16>, vector<8x2x8xf32> -> vector<8x2x8xf32>
    %cst_24 = arith.constant dense<0.000000e+00> : vector<8x2x8xf32>
    %17 = tpu.matmul %11, %14, %cst_24 {dimension_numbers = #tpu.dot_dimension_numbers<[2], [1], [1], [2], [0, 0, 0, 1, 1, 2], [0], [0]>} : vector<8x2x4xbf16>, vector<8x4x8xbf16>, vector<8x2x8xf32> -> vector<8x2x8xf32>
    %cst_25 = arith.constant dense<0.000000e+00> : vector<8x2x8xf32>
    %18 = tpu.matmul %12, %13, %cst_25 {dimension_numbers = #tpu.dot_dimension_numbers<[2], [1], [1], [2], [0, 0, 0, 1, 1, 2], [0], [0]>} : vector<8x2x4xbf16>, vector<8x4x8xbf16>, vector<8x2x8xf32> -> vector<8x2x8xf32>
    %19 = arith.subf %15, %16 : vector<8x2x8xf32>
    %20 = arith.addf %17, %18 : vector<8x2x8xf32>
    %21 = vector.shape_cast %5 : vector<8x2xf32> to vector<8x2x1xf32>
    %22 = vector.shape_cast %10 : vector<8x2xf32> to vector<8x2x1xf32>
    %23 = vector.broadcast %21 : vector<8x2x1xf32> to vector<8x2x8xf32>
    %24 = arith.mulf %19, %23 : vector<8x2x8xf32>
    %25 = vector.broadcast %22 : vector<8x2x1xf32> to vector<8x2x8xf32>
    %26 = arith.mulf %20, %25 : vector<8x2x8xf32>
    %27 = arith.subf %24, %26 : vector<8x2x8xf32>
    %c0_26 = arith.constant 0 : index
    %c0_27 = arith.constant 0 : index
    %c0_28 = arith.constant 0 : index
    %28 = vector.load %arg10[%c0_26, %c0_27, %c0_28] : memref<8x2x8xf32, #tpu.memory_space<vmem>>, vector<8x2x8xf32>
    tpu.vector_store %arg10[%c0_26, %c0_27, %c0_28], %27 {strides = array<i32>} : memref<8x2x8xf32, #tpu.memory_space<vmem>>, vector<8x2x8xf32>,
    %29 = vector.broadcast %22 : vector<8x2x1xf32> to vector<8x2x8xf32>
    %30 = arith.mulf %19, %29 : vector<8x2x8xf32>
    %31 = vector.broadcast %21 : vector<8x2x1xf32> to vector<8x2x8xf32>
    %32 = arith.mulf %20, %31 : vector<8x2x8xf32>
    %33 = arith.addf %30, %32 : vector<8x2x8xf32>
    %c0_29 = arith.constant 0 : index
    %c0_30 = arith.constant 0 : index
    %c0_31 = arith.constant 0 : index
    %34 = vector.load %arg11[%c0_29, %c0_30, %c0_31] : memref<8x2x8xf32, #tpu.memory_space<vmem>>, vector<8x2x8xf32>
    tpu.vector_store %arg11[%c0_29, %c0_30, %c0_31], %33 {strides = array<i32>} : memref<8x2x8xf32, #tpu.memory_space<vmem>>, vector<8x2x8xf32>,
    return
  }
  func.func @transform_0(%arg0: i32) -> (i32, i32) {
    %c0_i32 = arith.constant 0 : i32
    %c0_i32_0 = arith.constant 0 : i32
    %c0_i32_1 = arith.constant 0 : i32
    return %c0_i32, %c0_i32_0 : i32, i32
  }
  func.func @transform_1(%arg0: i32) -> (i32, i32) {
    %c0_i32 = arith.constant 0 : i32
    %c0_i32_0 = arith.constant 0 : i32
    return %arg0, %c0_i32 : i32, i32
  }
  func.func @transform_2(%arg0: i32) -> (i32, i32) {
    %c0_i32 = arith.constant 0 : i32
    %c0_i32_0 = arith.constant 0 : i32
    return %arg0, %c0_i32 : i32, i32
  }
  func.func @transform_3(%arg0: i32) -> (i32, i32) {
    %c0_i32 = arith.constant 0 : i32
    %c0_i32_0 = arith.constant 0 : i32
    return %arg0, %c0_i32 : i32, i32
  }
  func.func @transform_4(%arg0: i32) -> (i32, i32) {
    %c0_i32 = arith.constant 0 : i32
    %c0_i32_0 = arith.constant 0 : i32
    return %arg0, %c0_i32 : i32, i32
  }
  func.func @transform_5(%arg0: i32) -> (i32, i32, i32) {
    %c0_i32 = arith.constant 0 : i32
    %c0_i32_0 = arith.constant 0 : i32
    %c0_i32_1 = arith.constant 0 : i32
    return %arg0, %c0_i32, %c0_i32_0 : i32, i32, i32
  }
  func.func @transform_6(%arg0: i32) -> (i32, i32, i32) {
    %c0_i32 = arith.constant 0 : i32
    %c0_i32_0 = arith.constant 0 : i32
    %c0_i32_1 = arith.constant 0 : i32
    return %arg0, %c0_i32, %c0_i32_0 : i32, i32, i32
  }
  func.func @transform_7(%arg0: i32) -> (i32, i32, i32) {
    %c0_i32 = arith.constant 0 : i32
    %c0_i32_0 = arith.constant 0 : i32
    %c0_i32_1 = arith.constant 0 : i32
    return %arg0, %c0_i32, %c0_i32_0 : i32, i32, i32
  }
  func.func @transform_8(%arg0: i32) -> (i32, i32, i32) {
    %c0_i32 = arith.constant 0 : i32
    %c0_i32_0 = arith.constant 0 : i32
    %c0_i32_1 = arith.constant 0 : i32
    return %arg0, %c0_i32, %c0_i32_0 : i32, i32, i32
  }
  func.func @transform_9(%arg0: i32) -> (i32, i32, i32) {
    %c0_i32 = arith.constant 0 : i32
    %c0_i32_0 = arith.constant 0 : i32
    %c0_i32_1 = arith.constant 0 : i32
    return %arg0, %c0_i32, %c0_i32_0 : i32, i32, i32
  }
  func.func @transform_10(%arg0: i32) -> (i32, i32, i32) {
    %c0_i32 = arith.constant 0 : i32
    %c0_i32_0 = arith.constant 0 : i32
    %c0_i32_1 = arith.constant 0 : i32
    return %arg0, %c0_i32, %c0_i32_0 : i32, i32, i32
  }
}

</mosaic_0001>

<llo_original>
// kernel: tpu_custom_call.1
$region0: #{tpu_custom_call.1}
  #allocation0 [shape = 'u32[]', space=smem, size = 0x4, offset = 0x4, fixed_abs, tag = 'smem constant byte address 0x4 - core index']
  #allocation1 [shape = 'u32[144,128]{1,0:T(1,128)}', space=vmem, size = 0x12000, scoped, tag = 'internal scratch']
  %s0 = inlined_call_operand.vmem [shape: f32[3,2], index: 0, kind: input, shape index: {}]
  %s1 = inlined_call_operand.vmem [shape: f32[16,3], index: 1, kind: input, shape index: {}]
  %s2 = inlined_call_operand.vmem [shape: f32[16,3], index: 2, kind: input, shape index: {}]
  %s3 = inlined_call_operand.vmem [shape: f32[16,1], index: 3, kind: input, shape index: {}]
  %s4 = inlined_call_operand.vmem [shape: f32[16,1], index: 4, kind: input, shape index: {}]
  %s5 = inlined_call_operand.vmem [shape: bf16[16,2,4], index: 5, kind: input, shape index: {}]
  %s6 = inlined_call_operand.vmem [shape: bf16[16,2,4], index: 6, kind: input, shape index: {}]
  %s7 = inlined_call_operand.vmem [shape: bf16[16,4,8], index: 7, kind: input, shape index: {}]
  %s8 = inlined_call_operand.vmem [shape: bf16[16,4,8], index: 8, kind: input, shape index: {}]
  %s9 = inlined_call_operand.vmem [shape: f32[16,2,8], index: 9, kind: output, shape index: {0}]
  %s10 = inlined_call_operand.vmem [shape: f32[16,2,8], index: 10, kind: output, shape index: {1}]
  %11 = xla_tuple %s9, %s10
  %s12 = sld [smem:[#allocation0]]
  $region77: #{tpu_custom_call.1} parent=0
    _
  %s14 = ssub.s32 1, %s12
  %s15 = scalar_select 0, %s14, %s12
  loop: start=0, step=1, limit=4
  $region2: #{tpu_custom_call.1} parent=0 // loop_pre_header
    _
  $region3: #{tpu_custom_call.1} parent=0 // loop_header
    %s17 = sphi 0, %s21
    %p18 = scmp.ge.s32.totalorder %s17, 4
    %s25 = sphi 0, %s25
    %s27 = sphi 0, %s25
    %s28 = sphi 0, %s27
    %s42 = sphi 0, %s28
    %s48 = sphi 0, %s50
    %s51 = sphi 0, %s48
    %s52 = sphi 0, %s51
    %s68 = sphi 0, %s52
    %s74 = sphi 0, %s76
    %s77 = sphi 0, %s74
    %s78 = sphi 0, %s77
    %s94 = sphi 0, %s78
    %s100 = sphi 0, %s102
    %s103 = sphi 0, %s100
    %s104 = sphi 0, %s103
    %s120 = sphi 0, %s104
    %s126 = sphi 0, %s128
    %s129 = sphi 0, %s126
    %s130 = sphi 0, %s129
    %s146 = sphi 0, %s130
    %s152 = sphi 0, %s154
    %s155 = sphi 0, %s152
    %s156 = sphi 0, %s155
    %s172 = sphi 0, %s156
    %s178 = sphi 0, %s180
    %s181 = sphi 0, %s178
    %s182 = sphi 0, %s181
    %s198 = sphi 0, %s182
    %s204 = sphi 0, %s206
    %s207 = sphi 0, %s204
    %s208 = sphi 0, %s207
    %s224 = sphi 0, %s208
    %s230 = sphi 0, %s232
    %s233 = sphi 0, %s230
    %s234 = sphi 0, %s233
    %s250 = sphi 0, %s234
    %s256 = sphi 0, %s258
    %s259 = sphi 0, %s256
    %s260 = sphi 0, %s259
    %s276 = sphi 0, %s260
    %s282 = sphi 0, %s284
    %s285 = sphi 0, %s282
    %s286 = sphi 0, %s285
    %s302 = sphi 0, %s286
  $region4: #{tpu_custom_call.1} parent=0 // loop_header_branch
    %20 = sbr.rel (%p18) target = $region8
  $region5: #{tpu_custom_call.1} parent=0 // loop_body
    %s22 = ssub.s32 %s17, 1
    %s23 = ssub.s32 %s17, 2
    %s24 = sadd.s32 %s17, 1
    %s26 = sadd.s32 %s25, 1
    %p29 = scmp.eq.s32.totalorder %s17, 1
    %p30 = scmp.ne.s32.totalorder %s25, %s27
    %p31 = scmp.eq.s32.totalorder %s17, 0
    %p32 = por %p30, %p31
    %p33 = scmp.ne.s32.totalorder %s25, %s27
    %p34 = scmp.eq.s32.totalorder %s22, 1
    %p35 = por %p33, %p34
    %p36 = scmp.ne.s32.totalorder %s27, %s28
    %p37 = scmp.eq.s32.totalorder %s22, 0
    %p38 = por %p36, %p37
    %p39 = scmp.ne.s32.totalorder %s27, %s28
    %p40 = scmp.eq.s32.totalorder %s23, 1
    %p41 = por %p39, %p40
    %p43 = scmp.ne.s32.totalorder %s28, %s42
    %p44 = scmp.eq.s32.totalorder %s23, 0
    %p45 = por %p43, %p44
    %s46 = ssub.s32 %s17, %s24
    %p47 = scmp.eq.s32.totalorder %s46, 0
    %s49 = sadd.s32 %s48, 1
    %s50 = scalar_select %p47, %s48, %s49
    %p53 = pneg %p47
    %p54 = scmp.eq.s32.totalorder %s17, 1
    %p55 = por %p53, %p54
    %p56 = scmp.ne.s32.totalorder %s48, %s51
    %p57 = scmp.eq.s32.totalorder %s17, 0
    %p58 = por %p56, %p57
    %p59 = scmp.ne.s32.totalorder %s48, %s51
    %p60 = scmp.eq.s32.totalorder %s22, 1
    %p61 = por %p59, %p60
    %p62 = scmp.ne.s32.totalorder %s51, %s52
    %p63 = scmp.eq.s32.totalorder %s22, 0
    %p64 = por %p62, %p63
    %p65 = scmp.ne.s32.totalorder %s51, %s52
    %p66 = scmp.eq.s32.totalorder %s23, 1
    %p67 = por %p65, %p66
    %p69 = scmp.ne.s32.totalorder %s52, %s68
    %p70 = scmp.eq.s32.totalorder %s23, 0
    %p71 = por %p69, %p70
    %s72 = ssub.s32 %s17, %s24
    %p73 = scmp.eq.s32.totalorder %s72, 0
    %s75 = sadd.s32 %s74, 1
    %s76 = scalar_select %p73, %s74, %s75
    %p79 = pneg %p73
    %p80 = scmp.eq.s32.totalorder %s17, 1
    %p81 = por %p79, %p80
    %p82 = scmp.ne.s32.totalorder %s74, %s77
    %p83 = scmp.eq.s32.totalorder %s17, 0
    %p84 = por %p82, %p83
    %p85 = scmp.ne.s32.totalorder %s74, %s77
    %p86 = scmp.eq.s32.totalorder %s22, 1
    %p87 = por %p85, %p86
    %p88 = scmp.ne.s32.totalorder %s77, %s78
    %p89 = scmp.eq.s32.totalorder %s22, 0
    %p90 = por %p88, %p89
    %p91 = scmp.ne.s32.totalorder %s77, %s78
    %p92 = scmp.eq.s32.totalorder %s23, 1
    %p93 = por %p91, %p92
    %p95 = scmp.ne.s32.totalorder %s78, %s94
    %p96 = scmp.eq.s32.totalorder %s23, 0
    %p97 = por %p95, %p96
    %s98 = ssub.s32 %s17, %s24
    %p99 = scmp.eq.s32.totalorder %s98, 0
    %s101 = sadd.s32 %s100, 1
    %s102 = scalar_select %p99, %s100, %s101
    %p105 = pneg %p99
    %p106 = scmp.eq.s32.totalorder %s17, 1
    %p107 = por %p105, %p106
    %p108 = scmp.ne.s32.totalorder %s100, %s103
    %p109 = scmp.eq.s32.totalorder %s17, 0
    %p110 = por %p108, %p109
    %p111 = scmp.ne.s32.totalorder %s100, %s103
    %p112 = scmp.eq.s32.totalorder %s22, 1
    %p113 = por %p111, %p112
    %p114 = scmp.ne.s32.totalorder %s103, %s104
    %p115 = scmp.eq.s32.totalorder %s22, 0
    %p116 = por %p114, %p115
    %p117 = scmp.ne.s32.totalorder %s103, %s104
    %p118 = scmp.eq.s32.totalorder %s23, 1
    %p119 = por %p117, %p118
    %p121 = scmp.ne.s32.totalorder %s104, %s120
    %p122 = scmp.eq.s32.totalorder %s23, 0
    %p123 = por %p121, %p122
    %s124 = ssub.s32 %s17, %s24
    %p125 = scmp.eq.s32.totalorder %s124, 0
    %s127 = sadd.s32 %s126, 1
    %s128 = scalar_select %p125, %s126, %s127
    %p131 = pneg %p125
    %p132 = scmp.eq.s32.totalorder %s17, 1
    %p133 = por %p131, %p132
    %p134 = scmp.ne.s32.totalorder %s126, %s129
    %p135 = scmp.eq.s32.totalorder %s17, 0
    %p136 = por %p134, %p135
    %p137 = scmp.ne.s32.totalorder %s126, %s129
    %p138 = scmp.eq.s32.totalorder %s22, 1
    %p139 = por %p137, %p138
    %p140 = scmp.ne.s32.totalorder %s129, %s130
    %p141 = scmp.eq.s32.totalorder %s22, 0
    %p142 = por %p140, %p141
    %p143 = scmp.ne.s32.totalorder %s129, %s130
    %p144 = scmp.eq.s32.totalorder %s23, 1
    %p145 = por %p143, %p144
    %p147 = scmp.ne.s32.totalorder %s130, %s146
    %p148 = scmp.eq.s32.totalorder %s23, 0
    %p149 = por %p147, %p148
    %s150 = ssub.s32 %s17, %s24
    %p151 = scmp.eq.s32.totalorder %s150, 0
    %s153 = sadd.s32 %s152, 1
    %s154 = scalar_select %p151, %s152, %s153
    %p157 = pneg %p151
    %p158 = scmp.eq.s32.totalorder %s17, 1
    %p159 = por %p157, %p158
    %p160 = scmp.ne.s32.totalorder %s152, %s155
    %p161 = scmp.eq.s32.totalorder %s17, 0
    %p162 = por %p160, %p161
    %p163 = scmp.ne.s32.totalorder %s152, %s155
    %p164 = scmp.eq.s32.totalorder %s22, 1
    %p165 = por %p163, %p164
    %p166 = scmp.ne.s32.totalorder %s155, %s156
    %p167 = scmp.eq.s32.totalorder %s22, 0
    %p168 = por %p166, %p167
    %p169 = scmp.ne.s32.totalorder %s155, %s156
    %p170 = scmp.eq.s32.totalorder %s23, 1
    %p171 = por %p169, %p170
    %p173 = scmp.ne.s32.totalorder %s156, %s172
    %p174 = scmp.eq.s32.totalorder %s23, 0
    %p175 = por %p173, %p174
    %s176 = ssub.s32 %s17, %s24
    %p177 = scmp.eq.s32.totalorder %s176, 0
    %s179 = sadd.s32 %s178, 1
    %s180 = scalar_select %p177, %s178, %s179
    %p183 = pneg %p177
    %p184 = scmp.eq.s32.totalorder %s17, 1
    %p185 = por %p183, %p184
    %p186 = scmp.ne.s32.totalorder %s178, %s181
    %p187 = scmp.eq.s32.totalorder %s17, 0
    %p188 = por %p186, %p187
    %p189 = scmp.ne.s32.totalorder %s178, %s181
    %p190 = scmp.eq.s32.totalorder %s22, 1
    %p191 = por %p189, %p190
    %p192 = scmp.ne.s32.totalorder %s181, %s182
    %p193 = scmp.eq.s32.totalorder %s22, 0
    %p194 = por %p192, %p193
    %p195 = scmp.ne.s32.totalorder %s181, %s182
    %p196 = scmp.eq.s32.totalorder %s23, 1
    %p197 = por %p195, %p196
    %p199 = scmp.ne.s32.totalorder %s182, %s198
    %p200 = scmp.eq.s32.totalorder %s23, 0
    %p201 = por %p199, %p200
    %s202 = ssub.s32 %s17, %s24
    %p203 = scmp.eq.s32.totalorder %s202, 0
    %s205 = sadd.s32 %s204, 1
    %s206 = scalar_select %p203, %s204, %s205
    %p209 = pneg %p203
    %p210 = scmp.eq.s32.totalorder %s17, 1
    %p211 = por %p209, %p210
    %p212 = scmp.ne.s32.totalorder %s204, %s207
    %p213 = scmp.eq.s32.totalorder %s17, 0
    %p214 = por %p212, %p213
    %p215 = scmp.ne.s32.totalorder %s204, %s207
    %p216 = scmp.eq.s32.totalorder %s22, 1
    %p217 = por %p215, %p216
    %p218 = scmp.ne.s32.totalorder %s207, %s208
    %p219 = scmp.eq.s32.totalorder %s22, 0
    %p220 = por %p218, %p219
    %p221 = scmp.ne.s32.totalorder %s207, %s208
    %p222 = scmp.eq.s32.totalorder %s23, 1
    %p223 = por %p221, %p222
    %p225 = scmp.ne.s32.totalorder %s208, %s224
    %p226 = scmp.eq.s32.totalorder %s23, 0
    %p227 = por %p225, %p226
    %s228 = ssub.s32 %s17, %s24
    %p229 = scmp.eq.s32.totalorder %s228, 0
    %s231 = sadd.s32 %s230, 1
    %s232 = scalar_select %p229, %s230, %s231
    %p235 = pneg %p229
    %p236 = scmp.eq.s32.totalorder %s17, 1
    %p237 = por %p235, %p236
    %p238 = scmp.ne.s32.totalorder %s230, %s233
    %p239 = scmp.eq.s32.totalorder %s17, 0
    %p240 = por %p238, %p239
    %p241 = scmp.ne.s32.totalorder %s230, %s233
    %p242 = scmp.eq.s32.totalorder %s22, 1
    %p243 = por %p241, %p242
    %p244 = scmp.ne.s32.totalorder %s233, %s234
    %p245 = scmp.eq.s32.totalorder %s22, 0
    %p246 = por %p244, %p245
    %p247 = scmp.ne.s32.totalorder %s233, %s234
    %p248 = scmp.eq.s32.totalorder %s23, 1
    %p249 = por %p247, %p248
    %p251 = scmp.ne.s32.totalorder %s234, %s250
    %p252 = scmp.eq.s32.totalorder %s23, 0
    %p253 = por %p251, %p252
    %s254 = ssub.s32 %s17, %s24
    %p255 = scmp.eq.s32.totalorder %s254, 0
    %s257 = sadd.s32 %s256, 1
    %s258 = scalar_select %p255, %s256, %s257
    %p261 = pneg %p255
    %p262 = scmp.eq.s32.totalorder %s17, 1
    %p263 = por %p261, %p262
    %p264 = scmp.ne.s32.totalorder %s256, %s259
    %p265 = scmp.eq.s32.totalorder %s17, 0
    %p266 = por %p264, %p265
    %p267 = scmp.ne.s32.totalorder %s256, %s259
    %p268 = scmp.eq.s32.totalorder %s22, 1
    %p269 = por %p267, %p268
    %p270 = scmp.ne.s32.totalorder %s259, %s260
    %p271 = scmp.eq.s32.totalorder %s22, 0
    %p272 = por %p270, %p271
    %p273 = scmp.ne.s32.totalorder %s259, %s260
    %p274 = scmp.eq.s32.totalorder %s23, 1
    %p275 = por %p273, %p274
    %p277 = scmp.ne.s32.totalorder %s260, %s276
    %p278 = scmp.eq.s32.totalorder %s23, 0
    %p279 = por %p277, %p278
    %s280 = ssub.s32 %s17, %s24
    %p281 = scmp.eq.s32.totalorder %s280, 0
    %s283 = sadd.s32 %s282, 1
    %s284 = scalar_select %p281, %s282, %s283
    %p287 = pneg %p281
    %p288 = scmp.eq.s32.totalorder %s17, 1
    %p289 = por %p287, %p288
    %p290 = scmp.ne.s32.totalorder %s282, %s285
    %p291 = scmp.eq.s32.totalorder %s17, 0
    %p292 = por %p290, %p291
    %p293 = scmp.ne.s32.totalorder %s282, %s285
    %p294 = scmp.eq.s32.totalorder %s22, 1
    %p295 = por %p293, %p294
    %p296 = scmp.ne.s32.totalorder %s285, %s286
    %p297 = scmp.eq.s32.totalorder %s22, 0
    %p298 = por %p296, %p297
    %p299 = scmp.ne.s32.totalorder %s285, %s286
    %p300 = scmp.eq.s32.totalorder %s23, 1
    %p301 = por %p299, %p300
    %p303 = scmp.ne.s32.totalorder %s286, %s302
    %p304 = scmp.eq.s32.totalorder %s23, 0
    %p305 = por %p303, %p304
    %p306 = scmp.le.s32.totalorder 1, %s17
    %p307 = scmp.lt.s32.totalorder %s17, 3
    %p308 = pnand %p306, %p307
    %p309 = pneg %p308
    // Predicated region
    $region9: #{tpu_custom_call.1} parent=5 // pred_check
      _
    $region10: #{tpu_custom_call.1} parent=5 // pred_check_branch
      %311 = sbr.rel (%p308) target = $region12
    $region11: #{tpu_custom_call.1} parent=5 // pred_region
      %s312 = ssub.s32 %s17, 1
      // Predicated region
      $region13: #{tpu_custom_call.1} parent=11 // pred_check
        %p313 = pneg %p38
      $region14: #{tpu_custom_call.1} parent=11 // pred_check_branch
        %315 = sbr.rel (%p313) target = $region16
      $region15: #{tpu_custom_call.1} parent=11 // pred_region
        _
      $region16: #{tpu_custom_call.1} parent=11 // pred_fallthru
        _
    $region12: #{tpu_custom_call.1} parent=5 // pred_fallthru
      _
    %p316 = scmp.lt.s32.totalorder %s17, 2
    // Predicated region
    $region17: #{tpu_custom_call.1} parent=5 // pred_check
      %p317 = pneg %p316
    $region18: #{tpu_custom_call.1} parent=5 // pred_check_branch
      %319 = sbr.rel (%p317) target = $region20
    $region19: #{tpu_custom_call.1} parent=5 // pred_region
      // Predicated region
      $region21: #{tpu_custom_call.1} parent=19 // pred_check
        %p320 = pneg %p58
      $region22: #{tpu_custom_call.1} parent=19 // pred_check_branch
        %322 = sbr.rel (%p320) target = $region24
      $region23: #{tpu_custom_call.1} parent=19 // pred_region
        %p323 = scmp.lt.s32.totalorder %s17, 1
        %s324 = scalar_select %p323, %s17, 1
        %s325 = smul.addr %s324, 8
        %s326 = scalar_lea.vmem %s1, %s325
      $region24: #{tpu_custom_call.1} parent=19 // pred_fallthru
        _
      // Predicated region
      $region25: #{tpu_custom_call.1} parent=19 // pred_check
        %p327 = pneg %p84
      $region26: #{tpu_custom_call.1} parent=19 // pred_check_branch
        %329 = sbr.rel (%p327) target = $region28
      $region27: #{tpu_custom_call.1} parent=19 // pred_region
        %p330 = scmp.lt.s32.totalorder %s17, 1
        %s331 = scalar_select %p330, %s17, 1
        %s332 = smul.addr %s331, 8
        %s333 = scalar_lea.vmem %s2, %s332
      $region28: #{tpu_custom_call.1} parent=19 // pred_fallthru
        _
      // Predicated region
      $region29: #{tpu_custom_call.1} parent=19 // pred_check
        %p334 = pneg %p110
      $region30: #{tpu_custom_call.1} parent=19 // pred_check_branch
        %336 = sbr.rel (%p334) target = $region32
      $region31: #{tpu_custom_call.1} parent=19 // pred_region
        %p337 = scmp.lt.s32.totalorder %s17, 1
        %s338 = scalar_select %p337, %s17, 1
        %s339 = smul.addr %s338, 8
        %s340 = scalar_lea.vmem %s3, %s339
      $region32: #{tpu_custom_call.1} parent=19 // pred_fallthru
        _
      // Predicated region
      $region33: #{tpu_custom_call.1} parent=19 // pred_check
        %p341 = pneg %p136
      $region34: #{tpu_custom_call.1} parent=19 // pred_check_branch
        %343 = sbr.rel (%p341) target = $region36
      $region35: #{tpu_custom_call.1} parent=19 // pred_region
        %p344 = scmp.lt.s32.totalorder %s17, 1
        %s345 = scalar_select %p344, %s17, 1
        %s346 = smul.addr %s345, 8
        %s347 = scalar_lea.vmem %s4, %s346
      $region36: #{tpu_custom_call.1} parent=19 // pred_fallthru
        _
      // Predicated region
      $region37: #{tpu_custom_call.1} parent=19 // pred_check
        %p348 = pneg %p162
      $region38: #{tpu_custom_call.1} parent=19 // pred_check_branch
        %350 = sbr.rel (%p348) target = $region40
      $region39: #{tpu_custom_call.1} parent=19 // pred_region
        %s351 = smul.u32 8, %s17
        %p352 = scmp.lt.s32.totalorder %s351, 15
        %s353 = scalar_select %p352, %s351, 15
        %s354 = scalar_lea.vmem %s5, %s353
        %s355 = smul.u32 8, %s17
      $region40: #{tpu_custom_call.1} parent=19 // pred_fallthru
        _
      // Predicated region
      $region41: #{tpu_custom_call.1} parent=19 // pred_check
        %p356 = pneg %p188
      $region42: #{tpu_custom_call.1} parent=19 // pred_check_branch
        %358 = sbr.rel (%p356) target = $region44
      $region43: #{tpu_custom_call.1} parent=19 // pred_region
        %s359 = smul.u32 8, %s17
        %p360 = scmp.lt.s32.totalorder %s359, 15
        %s361 = scalar_select %p360, %s359, 15
        %s362 = scalar_lea.vmem %s6, %s361
        %s363 = smul.u32 8, %s17
      $region44: #{tpu_custom_call.1} parent=19 // pred_fallthru
        _
      // Predicated region
      $region45: #{tpu_custom_call.1} parent=19 // pred_check
        %p364 = pneg %p214
      $region46: #{tpu_custom_call.1} parent=19 // pred_check_branch
        %366 = sbr.rel (%p364) target = $region48
      $region47: #{tpu_custom_call.1} parent=19 // pred_region
        %s367 = smul.u32 8, %s17
        %p368 = scmp.lt.s32.totalorder %s367, 15
        %s369 = scalar_select %p368, %s367, 15
        %s370 = smul.addr %s369, 2
        %s371 = scalar_lea.vmem %s7, %s370
        %s372 = smul.u32 8, %s17
      $region48: #{tpu_custom_call.1} parent=19 // pred_fallthru
        _
      // Predicated region
      $region49: #{tpu_custom_call.1} parent=19 // pred_check
        %p373 = pneg %p240
      $region50: #{tpu_custom_call.1} parent=19 // pred_check_branch
        %375 = sbr.rel (%p373) target = $region52
      $region51: #{tpu_custom_call.1} parent=19 // pred_region
        %s376 = smul.u32 8, %s17
        %p377 = scmp.lt.s32.totalorder %s376, 15
        %s378 = scalar_select %p377, %s376, 15
        %s379 = smul.addr %s378, 2
        %s380 = scalar_lea.vmem %s8, %s379
        %s381 = smul.u32 8, %s17
      $region52: #{tpu_custom_call.1} parent=19 // pred_fallthru
        _
    $region20: #{tpu_custom_call.1} parent=5 // pred_fallthru
      _
    %p382 = scmp.le.s32.totalorder 1, %s17
    %p383 = scmp.lt.s32.totalorder %s17, 3
    %p384 = pnand %p382, %p383
    %p385 = pneg %p384
    // Predicated region
    $region53: #{tpu_custom_call.1} parent=5 // pred_check
      _
    $region54: #{tpu_custom_call.1} parent=5 // pred_check_branch
      %387 = sbr.rel (%p384) target = $region56
    $region55: #{tpu_custom_call.1} parent=5 // pred_region
      %s388 = ssub.s32 %s17, 1
      %p389 = pneg %p38
      %p390 = pneg %p35
      %p391 = scmp.lt.s32.totalorder %s22, 1
      %s392 = scalar_select %p391, %s22, 1
      %s393 = smul.addr %s392, 8
      %s394 = scalar_lea.vmem %s1, %s393
      %p395 = pneg %p64
      %p396 = pneg %p61
      %p397 = scmp.lt.s32.totalorder %s22, 1
      %s398 = scalar_select %p397, %s22, 1
      %s399 = smul.addr %s398, 8
      %s400 = scalar_lea.vmem %s2, %s399
      %p401 = pneg %p90
      %p402 = pneg %p87
      %p403 = scmp.lt.s32.totalorder %s22, 1
      %s404 = scalar_select %p403, %s22, 1
      %s405 = smul.addr %s404, 8
      %s406 = scalar_lea.vmem %s3, %s405
      %p407 = pneg %p116
      %p408 = pneg %p113
      %p409 = scmp.lt.s32.totalorder %s22, 1
      %s410 = scalar_select %p409, %s22, 1
      %s411 = smul.addr %s410, 8
      %s412 = scalar_lea.vmem %s4, %s411
      %p413 = pneg %p142
      %p414 = pneg %p139
      %s415 = smul.u32 8, %s22
      %p416 = scmp.lt.s32.totalorder %s415, 15
      %s417 = scalar_select %p416, %s415, 15
      %s418 = scalar_lea.vmem %s5, %s417
      %p419 = pneg %p168
      %p420 = pneg %p165
      %s421 = smul.u32 8, %s22
      %p422 = scmp.lt.s32.totalorder %s421, 15
      %s423 = scalar_select %p422, %s421, 15
      %s424 = scalar_lea.vmem %s6, %s423
      %p425 = pneg %p194
      %p426 = pneg %p191
      %s427 = smul.u32 8, %s22
      %p428 = scmp.lt.s32.totalorder %s427, 15
      %s429 = scalar_select %p428, %s427, 15
      %s430 = smul.addr %s429, 2
      %s431 = scalar_lea.vmem %s7, %s430
      %p432 = pneg %p220
      %p433 = pneg %p217
      %s434 = smul.u32 8, %s22
      %p435 = scmp.lt.s32.totalorder %s434, 15
      %s436 = scalar_select %p435, %s434, 15
      %s437 = smul.addr %s436, 2
      %s438 = scalar_lea.vmem %s8, %s437
      %p439 = pneg %p246
      %p440 = pneg %p243
      %p441 = pneg %p272
      %p442 = pneg %p269
      %s443 = smul.u32 8, %s22
      %p444 = scmp.lt.s32.totalorder %s443, 15
      %s445 = scalar_select %p444, %s443, 15
      %s446 = smul.addr %s445, 2
      %s447 = scalar_lea.vmem %s9, %s446
      %p448 = pneg %p298
      %p449 = pneg %p295
      %s450 = smul.u32 8, %s22
      %p451 = scmp.lt.s32.totalorder %s450, 15
      %s452 = scalar_select %p451, %s450, 15
      %s453 = smul.addr %s452, 2
      %s454 = scalar_lea.vmem %s10, %s453
      %p455 = scmp.lt.s32.totalorder %s22, 1
      %s456 = scalar_select %p455, %s22, 1
      %s457 = smul.addr %s456, 8
      %s458 = scalar_lea.vmem %s1, %s457
      %p459 = scmp.lt.s32.totalorder %s22, 1
      %s460 = scalar_select %p459, %s22, 1
      %s461 = smul.addr %s460, 8
      %s462 = scalar_lea.vmem %s2, %s461
      %p463 = scmp.lt.s32.totalorder %s22, 1
      %s464 = scalar_select %p463, %s22, 1
      %s465 = smul.addr %s464, 8
      %s466 = scalar_lea.vmem %s3, %s465
      %p467 = scmp.lt.s32.totalorder %s22, 1
      %s468 = scalar_select %p467, %s22, 1
      %s469 = smul.addr %s468, 8
      %s470 = scalar_lea.vmem %s4, %s469
      %s471 = smul.u32 8, %s22
      %p472 = scmp.lt.s32.totalorder %s471, 15
      %s473 = scalar_select %p472, %s471, 15
      %s474 = scalar_lea.vmem %s5, %s473
      %s475 = smul.u32 8, %s22
      %s476 = smul.u32 8, %s22
      %p477 = scmp.lt.s32.totalorder %s476, 15
      %s478 = scalar_select %p477, %s476, 15
      %s479 = scalar_lea.vmem %s6, %s478
      %s480 = smul.u32 8, %s22
      %s481 = smul.u32 8, %s22
      %p482 = scmp.lt.s32.totalorder %s481, 15
      %s483 = scalar_select %p482, %s481, 15
      %s484 = smul.addr %s483, 2
      %s485 = scalar_lea.vmem %s7, %s484
      %s486 = smul.u32 8, %s22
      %s487 = smul.u32 8, %s22
      %p488 = scmp.lt.s32.totalorder %s487, 15
      %s489 = scalar_select %p488, %s487, 15
      %s490 = smul.addr %s489, 2
      %s491 = scalar_lea.vmem %s8, %s490
      %s492 = smul.u32 8, %s22
      %s493 = smul.u32 8, %s22
      %p494 = scmp.lt.s32.totalorder %s493, 15
      %s495 = scalar_select %p494, %s493, 15
      %s496 = smul.addr %s495, 2
      %s497 = scalar_lea.vmem %s9, %s496
      %s498 = smul.u32 8, %s22
      %s499 = smul.u32 8, %s22
      %p500 = scmp.lt.s32.totalorder %s499, 15
      %s501 = scalar_select %p500, %s499, 15
      %s502 = smul.addr %s501, 2
      %s503 = scalar_lea.vmem %s10, %s502
      %s504 = smul.u32 8, %s22
      %v506 = vld [vmem:[%s0] sm:$0x7]
      %v507 = vld [vmem:[%s458] sm:$0xff]
      %v508 = vld [vmem:[%s466] sm:$0xff]
      %510 = vset.pattern.permute.xlu0 0
      %511 = vperm.xlu0 %510, %v508
      %v512 = vpop.permute.xlu0 %511
      %vm514 = vcmask 23552
      %v516 = vsel %vm514, %v507, 0
      %vm518 = vcmask 1042432
      %v520 = vsel %vm518, %v506, 0
      %522 = vmatprep.subr.mxu0 0.0
      %523 = vmatpush1.msra.mxu0 0.0
      %524 = vmatprep.subr.mxu0 0.0
      %525 = vmatpush1.msra.mxu0 0.0
      %526 = vmatprep.subr.mxu0 0.0
      %527 = vmatpush1.msra.mxu0 0.0
      %528 = vmatprep.subr.mxu0 0.0
      %529 = vmatpush1.msra.mxu0 0.0
      %530 = vmatprep.subr.mxu0 0.0
      %531 = vmatpush1.msra.mxu0 0.0
      %532 = vmatprep.subr.mxu0 0.0
      %533 = vmatpush1.msra.mxu0 0.0
      %534 = vmatprep.subr.mxu0 0.0
      %535 = vmatpush1.msra.mxu0 0.0
      %536 = vmatprep.subr.mxu0 0.0
      %537 = vmatpush1.msra.mxu0 0.0
      %538 = vmatprep.subr.mxu0 0.0
      %539 = vmatpush1.msra.mxu0 0.0
      %540 = vmatprep.subr.mxu0 0.0
      %541 = vmatpush1.msra.mxu0 0.0
      %542 = vmatprep.subr.mxu0 0.0
      %543 = vmatpush1.msra.mxu0 0.0
      %544 = vmatprep.subr.mxu0 0.0
      %545 = vmatpush1.msra.mxu0 0.0
      %546 = vmatprep.subr.mxu0 0.0
      %547 = vmatpush1.msra.mxu0 0.0
      %548 = vmatprep.subr.mxu0 0.0
      %549 = vmatpush1.msra.mxu0 0.0
      %550 = vmatprep.subr.mxu0 0.0
      %551 = vmatpush1.msra.mxu0 0.0
      %552 = vmatprep.subr.mxu0 0.0
      %553 = vmatpush1.msra.mxu0 %v520
      %554 = vmatprep.subr.mxu0 0.0
      %555 = vmatpush2.msra.mxu0 0.0
      %556 = vmatprep.subr.mxu0 0.0
      %557 = vmatpush2.msra.mxu0 0.0
      %558 = vmatprep.subr.mxu0 0.0
      %559 = vmatpush2.msra.mxu0 0.0
      %560 = vmatprep.subr.mxu0 0.0
      %561 = vmatpush2.msra.mxu0 0.0
      %562 = vmatprep.subr.mxu0 0.0
      %563 = vmatpush2.msra.mxu0 0.0
      %564 = vmatprep.subr.mxu0 0.0
      %565 = vmatpush2.msra.mxu0 0.0
      %566 = vmatprep.subr.mxu0 0.0
      %567 = vmatpush2.msra.mxu0 0.0
      %568 = vmatprep.subr.mxu0 0.0
      %569 = vmatpush2.msra.mxu0 0.0
      %570 = vmatprep.subr.mxu0 0.0
      %571 = vmatpush2.msra.mxu0 0.0
      %572 = vmatprep.subr.mxu0 0.0
      %573 = vmatpush2.msra.mxu0 0.0
      %574 = vmatprep.subr.mxu0 0.0
      %575 = vmatpush2.msra.mxu0 0.0
      %576 = vmatprep.subr.mxu0 0.0
      %577 = vmatpush2.msra.mxu0 0.0
      %578 = vmatprep.subr.mxu0 0.0
      %579 = vmatpush2.msra.mxu0 0.0
      %580 = vmatprep.subr.mxu0 0.0
      %581 = vmatpush2.msra.mxu0 0.0
      %582 = vmatprep.subr.mxu0 0.0
      %583 = vmatpush2.msra.mxu0 0.0
      %584 = vmatprep.subr.mxu0 0.0
      %585 = vmatpush2.msra.mxu0 0.0
      %586 = vmatprep.mubr.f32.mxu0 0.0
      %587 = vmatmul.mubr.f32.gmra.mxu0 %v516
      %v588 = vpop.f32.mrf.mxu0
      %v589 = vadd.f32 %v512, %v588
      %v590 = vpop.f32.mrf.mxu0
      %591 = vdwg.mxu0
      %v592 = vld [vmem:[%s462] sm:$0xff]
      %v593 = vld [vmem:[%s470] sm:$0xff]
      %595 = vset.pattern.permute.xlu0 0
      %596 = vperm.xlu0 %595, %v593
      %v597 = vpop.permute.xlu0 %596
      %v600 = vsel %vm514, %v592, 0
      %602 = vmatprep.subr.mxu0 0.0
      %603 = vmatpush1.msra.mxu0 0.0
      %604 = vmatprep.subr.mxu0 0.0
      %605 = vmatpush1.msra.mxu0 0.0
      %606 = vmatprep.subr.mxu0 0.0
      %607 = vmatpush1.msra.mxu0 0.0
      %608 = vmatprep.subr.mxu0 0.0
      %609 = vmatpush1.msra.mxu0 0.0
      %610 = vmatprep.subr.mxu0 0.0
      %611 = vmatpush1.msra.mxu0 0.0
      %612 = vmatprep.subr.mxu0 0.0
      %613 = vmatpush1.msra.mxu0 0.0
      %614 = vmatprep.subr.mxu0 0.0
      %615 = vmatpush1.msra.mxu0 0.0
      %616 = vmatprep.subr.mxu0 0.0
      %617 = vmatpush1.msra.mxu0 0.0
      %618 = vmatprep.subr.mxu0 0.0
      %619 = vmatpush1.msra.mxu0 0.0
      %620 = vmatprep.subr.mxu0 0.0
      %621 = vmatpush1.msra.mxu0 0.0
      %622 = vmatprep.subr.mxu0 0.0
      %623 = vmatpush1.msra.mxu0 0.0
      %624 = vmatprep.subr.mxu0 0.0
      %625 = vmatpush1.msra.mxu0 0.0
      %626 = vmatprep.subr.mxu0 0.0
      %627 = vmatpush1.msra.mxu0 0.0
      %628 = vmatprep.subr.mxu0 0.0
      %629 = vmatpush1.msra.mxu0 0.0
      %630 = vmatprep.subr.mxu0 0.0
      %631 = vmatpush1.msra.mxu0 0.0
      %632 = vmatprep.subr.mxu0 0.0
      %633 = vmatpush1.msra.mxu0 %v520
      %634 = vmatprep.subr.mxu0 0.0
      %635 = vmatpush2.msra.mxu0 0.0
      %636 = vmatprep.subr.mxu0 0.0
      %637 = vmatpush2.msra.mxu0 0.0
      %638 = vmatprep.subr.mxu0 0.0
      %639 = vmatpush2.msra.mxu0 0.0
      %640 = vmatprep.subr.mxu0 0.0
      %641 = vmatpush2.msra.mxu0 0.0
      %642 = vmatprep.subr.mxu0 0.0
      %643 = vmatpush2.msra.mxu0 0.0
      %644 = vmatprep.subr.mxu0 0.0
      %645 = vmatpush2.msra.mxu0 0.0
      %646 = vmatprep.subr.mxu0 0.0
      %647 = vmatpush2.msra.mxu0 0.0
      %648 = vmatprep.subr.mxu0 0.0
      %649 = vmatpush2.msra.mxu0 0.0
      %650 = vmatprep.subr.mxu0 0.0
      %651 = vmatpush2.msra.mxu0 0.0
      %652 = vmatprep.subr.mxu0 0.0
      %653 = vmatpush2.msra.mxu0 0.0
      %654 = vmatprep.subr.mxu0 0.0
      %655 = vmatpush2.msra.mxu0 0.0
      %656 = vmatprep.subr.mxu0 0.0
      %657 = vmatpush2.msra.mxu0 0.0
      %658 = vmatprep.subr.mxu0 0.0
      %659 = vmatpush2.msra.mxu0 0.0
      %660 = vmatprep.subr.mxu0 0.0
      %661 = vmatpush2.msra.mxu0 0.0
      %662 = vmatprep.subr.mxu0 0.0
      %663 = vmatpush2.msra.mxu0 0.0
      %664 = vmatprep.subr.mxu0 0.0
      %665 = vmatpush2.msra.mxu0 0.0
      %666 = vmatprep.mubr.f32.mxu0 0.0
      %667 = vmatmul.mubr.f32.gmra.mxu0 %v600
      %v668 = vpop.f32.mrf.mxu0
      %v669 = vadd.f32 %v597, %v668
      %v670 = vpop.f32.mrf.mxu0
      %671 = vdwg.mxu0
      %v672 = vld [vmem:[%s474] sm:$0x1]
      %v673 = vld [vmem:[%s474 + $0x1] sm:$0x1]
      %v674 = vld [vmem:[%s474 + $0x2] sm:$0x1]
      %v675 = vld [vmem:[%s474 + $0x3] sm:$0x1]
      %v676 = vld [vmem:[%s474 + $0x4] sm:$0x1]
      %v677 = vld [vmem:[%s474 + $0x5] sm:$0x1]
      %v678 = vld [vmem:[%s474 + $0x6] sm:$0x1]
      %v679 = vld [vmem:[%s474 + $0x7] sm:$0x1]
      %v680 = vld [vmem:[%s479] sm:$0x1]
      %v681 = vld [vmem:[%s479 + $0x1] sm:$0x1]
      %v682 = vld [vmem:[%s479 + $0x2] sm:$0x1]
      %v683 = vld [vmem:[%s479 + $0x3] sm:$0x1]
      %v684 = vld [vmem:[%s479 + $0x4] sm:$0x1]
      %v685 = vld [vmem:[%s479 + $0x5] sm:$0x1]
      %v686 = vld [vmem:[%s479 + $0x6] sm:$0x1]
      %v687 = vld [vmem:[%s479 + $0x7] sm:$0x1]
      %v688 = vld [vmem:[%s485] sm:$0x3]
      %v689 = vld [vmem:[%s485 + $0x2] sm:$0x3]
      %v690 = vld [vmem:[%s485 + $0x4] sm:$0x3]
      %v691 = vld [vmem:[%s485 + $0x6] sm:$0x3]
      %v692 = vld [vmem:[%s485 + $0x8] sm:$0x3]
      %v693 = vld [vmem:[%s485 + $0xa] sm:$0x3]
      %v694 = vld [vmem:[%s485 + $0xc] sm:$0x3]
      %v695 = vld [vmem:[%s485 + $0xe] sm:$0x3]
      %v696 = vld [vmem:[%s491] sm:$0x3]
      %v697 = vld [vmem:[%s491 + $0x2] sm:$0x3]
      %v698 = vld [vmem:[%s491 + $0x4] sm:$0x3]
      %v699 = vld [vmem:[%s491 + $0x6] sm:$0x3]
      %v700 = vld [vmem:[%s491 + $0x8] sm:$0x3]
      %v701 = vld [vmem:[%s491 + $0xa] sm:$0x3]
      %v702 = vld [vmem:[%s491 + $0xc] sm:$0x3]
      %v703 = vld [vmem:[%s491 + $0xe] sm:$0x3]
      %vm704 = vcmask 31744
      %v706 = vsel %vm704, %v672, 0
      %vm708 = vcmask 1041408
      %v710 = vsel %vm708, %v688, 0
      %712 = vmatprep.subr.bf16.mxu0 0
      %713 = vmatpush1.bf16.msra.mxu0 0
      %714 = vmatprep.subr.bf16.mxu0 0
      %715 = vmatpush1.bf16.msra.mxu0 0
      %716 = vmatprep.subr.bf16.mxu0 0
      %717 = vmatpush1.bf16.msra.mxu0 0
      %718 = vmatprep.subr.bf16.mxu0 0
      %719 = vmatpush1.bf16.msra.mxu0 0
      %720 = vmatprep.subr.bf16.mxu0 0
      %721 = vmatpush1.bf16.msra.mxu0 0
      %722 = vmatprep.subr.bf16.mxu0 0
      %723 = vmatpush1.bf16.msra.mxu0 0
      %724 = vmatprep.subr.bf16.mxu0 0
      %725 = vmatpush1.bf16.msra.mxu0 0
      %726 = vmatprep.subr.bf16.mxu0 0
      %727 = vmatpush1.bf16.msra.mxu0 %v710
      %728 = vmatprep.subr.bf16.mxu0 0
      %729 = vmatpush2.bf16.msra.mxu0 0
      %730 = vmatprep.subr.bf16.mxu0 0
      %731 = vmatpush2.bf16.msra.mxu0 0
      %732 = vmatprep.subr.bf16.mxu0 0
      %733 = vmatpush2.bf16.msra.mxu0 0
      %734 = vmatprep.subr.bf16.mxu0 0
      %735 = vmatpush2.bf16.msra.mxu0 0
      %736 = vmatprep.subr.bf16.mxu0 0
      %737 = vmatpush2.bf16.msra.mxu0 0
      %738 = vmatprep.subr.bf16.mxu0 0
      %739 = vmatpush2.bf16.msra.mxu0 0
      %740 = vmatprep.subr.bf16.mxu0 0
      %741 = vmatpush2.bf16.msra.mxu0 0
      %742 = vmatprep.subr.bf16.mxu0 0
      %743 = vmatpush2.bf16.msra.mxu0 0
      %744 = vmatprep.mubr.bf16.mxu0 0
      %745 = vmatmul.mubr.bf16.gmra.mxu0 %v706
      %v746 = vpop.f32.mrf.mxu0
      %v747 = vadd.f32 0.0, %v746
      %v748 = vpop.f32.mrf.mxu0
      %v749 = vpop.f32.mrf.mxu0
      %v750 = vpop.f32.mrf.mxu0
      %751 = vdwg.mxu0
      %v753 = vsel %vm704, %v673, 0
      %v756 = vsel %vm708, %v689, 0
      %758 = vmatprep.subr.bf16.mxu0 0
      %759 = vmatpush1.bf16.msra.mxu0 0
      %760 = vmatprep.subr.bf16.mxu0 0
      %761 = vmatpush1.bf16.msra.mxu0 0
      %762 = vmatprep.subr.bf16.mxu0 0
      %763 = vmatpush1.bf16.msra.mxu0 0
      %764 = vmatprep.subr.bf16.mxu0 0
      %765 = vmatpush1.bf16.msra.mxu0 0
      %766 = vmatprep.subr.bf16.mxu0 0
      %767 = vmatpush1.bf16.msra.mxu0 0
      %768 = vmatprep.subr.bf16.mxu0 0
      %769 = vmatpush1.bf16.msra.mxu0 0
      %770 = vmatprep.subr.bf16.mxu0 0
      %771 = vmatpush1.bf16.msra.mxu0 0
      %772 = vmatprep.subr.bf16.mxu0 0
      %773 = vmatpush1.bf16.msra.mxu0 %v756
      %774 = vmatprep.subr.bf16.mxu0 0
      %775 = vmatpush2.bf16.msra.mxu0 0
      %776 = vmatprep.subr.bf16.mxu0 0
      %777 = vmatpush2.bf16.msra.mxu0 0
      %778 = vmatprep.subr.bf16.mxu0 0
      %779 = vmatpush2.bf16.msra.mxu0 0
      %780 = vmatprep.subr.bf16.mxu0 0
      %781 = vmatpush2.bf16.msra.mxu0 0
      %782 = vmatprep.subr.bf16.mxu0 0
      %783 = vmatpush2.bf16.msra.mxu0 0
      %784 = vmatprep.subr.bf16.mxu0 0
      %785 = vmatpush2.bf16.msra.mxu0 0
      %786 = vmatprep.subr.bf16.mxu0 0
      %787 = vmatpush2.bf16.msra.mxu0 0
      %788 = vmatprep.subr.bf16.mxu0 0
      %789 = vmatpush2.bf16.msra.mxu0 0
      %790 = vmatprep.mubr.bf16.mxu0 0
      %791 = vmatmul.mubr.bf16.gmra.mxu0 %v753
      %v792 = vpop.f32.mrf.mxu0
      %v793 = vadd.f32 0.0, %v792
      %v794 = vpop.f32.mrf.mxu0
      %v795 = vpop.f32.mrf.mxu0
      %v796 = vpop.f32.mrf.mxu0
      %797 = vdwg.mxu0
      %v799 = vsel %vm704, %v674, 0
      %v802 = vsel %vm708, %v690, 0
      %804 = vmatprep.subr.bf16.mxu0 0
      %805 = vmatpush1.bf16.msra.mxu0 0
      %806 = vmatprep.subr.bf16.mxu0 0
      %807 = vmatpush1.bf16.msra.mxu0 0
      %808 = vmatprep.subr.bf16.mxu0 0
      %809 = vmatpush1.bf16.msra.mxu0 0
      %810 = vmatprep.subr.bf16.mxu0 0
      %811 = vmatpush1.bf16.msra.mxu0 0
      %812 = vmatprep.subr.bf16.mxu0 0
      %813 = vmatpush1.bf16.msra.mxu0 0
      %814 = vmatprep.subr.bf16.mxu0 0
      %815 = vmatpush1.bf16.msra.mxu0 0
      %816 = vmatprep.subr.bf16.mxu0 0
      %817 = vmatpush1.bf16.msra.mxu0 0
      %818 = vmatprep.subr.bf16.mxu0 0
      %819 = vmatpush1.bf16.msra.mxu0 %v802
      %820 = vmatprep.subr.bf16.mxu0 0
      %821 = vmatpush2.bf16.msra.mxu0 0
      %822 = vmatprep.subr.bf16.mxu0 0
      %823 = vmatpush2.bf16.msra.mxu0 0
      %824 = vmatprep.subr.bf16.mxu0 0
      %825 = vmatpush2.bf16.msra.mxu0 0
      %826 = vmatprep.subr.bf16.mxu0 0
      %827 = vmatpush2.bf16.msra.mxu0 0
      %828 = vmatprep.subr.bf16.mxu0 0
      %829 = vmatpush2.bf16.msra.mxu0 0
      %830 = vmatprep.subr.bf16.mxu0 0
      %831 = vmatpush2.bf16.msra.mxu0 0
      %832 = vmatprep.subr.bf16.mxu0 0
      %833 = vmatpush2.bf16.msra.mxu0 0
      %834 = vmatprep.subr.bf16.mxu0 0
      %835 = vmatpush2.bf16.msra.mxu0 0
      %836 = vmatprep.mubr.bf16.mxu0 0
      %837 = vmatmul.mubr.bf16.gmra.mxu0 %v799
      %v838 = vpop.f32.mrf.mxu0
      %v839 = vadd.f32 0.0, %v838
      %v840 = vpop.f32.mrf.mxu0
      %v841 = vpop.f32.mrf.mxu0
      %v842 = vpop.f32.mrf.mxu0
      %843 = vdwg.mxu0
      %v845 = vsel %vm704, %v675, 0
      %v848 = vsel %vm708, %v691, 0
      %850 = vmatprep.subr.bf16.mxu0 0
      %851 = vmatpush1.bf16.msra.mxu0 0
      %852 = vmatprep.subr.bf16.mxu0 0
      %853 = vmatpush1.bf16.msra.mxu0 0
      %854 = vmatprep.subr.bf16.mxu0 0
      %855 = vmatpush1.bf16.msra.mxu0 0
      %856 = vmatprep.subr.bf16.mxu0 0
      %857 = vmatpush1.bf16.msra.mxu0 0
      %858 = vmatprep.subr.bf16.mxu0 0
      %859 = vmatpush1.bf16.msra.mxu0 0
      %860 = vmatprep.subr.bf16.mxu0 0
      %861 = vmatpush1.bf16.msra.mxu0 0
      %862 = vmatprep.subr.bf16.mxu0 0
      %863 = vmatpush1.bf16.msra.mxu0 0
      %864 = vmatprep.subr.bf16.mxu0 0
      %865 = vmatpush1.bf16.msra.mxu0 %v848
      %866 = vmatprep.subr.bf16.mxu0 0
      %867 = vmatpush2.bf16.msra.mxu0 0
      %868 = vmatprep.subr.bf16.mxu0 0
      %869 = vmatpush2.bf16.msra.mxu0 0
      %870 = vmatprep.subr.bf16.mxu0 0
      %871 = vmatpush2.bf16.msra.mxu0 0
      %872 = vmatprep.subr.bf16.mxu0 0
      %873 = vmatpush2.bf16.msra.mxu0 0
      %874 = vmatprep.subr.bf16.mxu0 0
      %875 = vmatpush2.bf16.msra.mxu0 0
      %876 = vmatprep.subr.bf16.mxu0 0
      %877 = vmatpush2.bf16.msra.mxu0 0
      %878 = vmatprep.subr.bf16.mxu0 0
      %879 = vmatpush2.bf16.msra.mxu0 0
      %880 = vmatprep.subr.bf16.mxu0 0
      %881 = vmatpush2.bf16.msra.mxu0 0
      %882 = vmatprep.mubr.bf16.mxu0 0
      %883 = vmatmul.mubr.bf16.gmra.mxu0 %v845
      %v884 = vpop.f32.mrf.mxu0
      %v885 = vadd.f32 0.0, %v884
      %v886 = vpop.f32.mrf.mxu0
      %v887 = vpop.f32.mrf.mxu0
      %v888 = vpop.f32.mrf.mxu0
      %889 = vdwg.mxu0
      %v891 = vsel %vm704, %v676, 0
      %v894 = vsel %vm708, %v692, 0
      %896 = vmatprep.subr.bf16.mxu0 0
      %897 = vmatpush1.bf16.msra.mxu0 0
      %898 = vmatprep.subr.bf16.mxu0 0
      %899 = vmatpush1.bf16.msra.mxu0 0
      %900 = vmatprep.subr.bf16.mxu0 0
      %901 = vmatpush1.bf16.msra.mxu0 0
      %902 = vmatprep.subr.bf16.mxu0 0
      %903 = vmatpush1.bf16.msra.mxu0 0
      %904 = vmatprep.subr.bf16.mxu0 0
      %905 = vmatpush1.bf16.msra.mxu0 0
      %906 = vmatprep.subr.bf16.mxu0 0
      %907 = vmatpush1.bf16.msra.mxu0 0
      %908 = vmatprep.subr.bf16.mxu0 0
      %909 = vmatpush1.bf16.msra.mxu0 0
      %910 = vmatprep.subr.bf16.mxu0 0
      %911 = vmatpush1.bf16.msra.mxu0 %v894
      %912 = vmatprep.subr.bf16.mxu0 0
      %913 = vmatpush2.bf16.msra.mxu0 0
      %914 = vmatprep.subr.bf16.mxu0 0
      %915 = vmatpush2.bf16.msra.mxu0 0
      %916 = vmatprep.subr.bf16.mxu0 0
      %917 = vmatpush2.bf16.msra.mxu0 0
      %918 = vmatprep.subr.bf16.mxu0 0
      %919 = vmatpush2.bf16.msra.mxu0 0
      %920 = vmatprep.subr.bf16.mxu0 0
      %921 = vmatpush2.bf16.msra.mxu0 0
      %922 = vmatprep.subr.bf16.mxu0 0
      %923 = vmatpush2.bf16.msra.mxu0 0
      %924 = vmatprep.subr.bf16.mxu0 0
      %925 = vmatpush2.bf16.msra.mxu0 0
      %926 = vmatprep.subr.bf16.mxu0 0
      %927 = vmatpush2.bf16.msra.mxu0 0
      %928 = vmatprep.mubr.bf16.mxu0 0
      %929 = vmatmul.mubr.bf16.gmra.mxu0 %v891
      %v930 = vpop.f32.mrf.mxu0
      %v931 = vadd.f32 0.0, %v930
      %v932 = vpop.f32.mrf.mxu0
      %v933 = vpop.f32.mrf.mxu0
      %v934 = vpop.f32.mrf.mxu0
      %935 = vdwg.mxu0
      %v937 = vsel %vm704, %v677, 0
      %v940 = vsel %vm708, %v693, 0
      %942 = vmatprep.subr.bf16.mxu0 0
      %943 = vmatpush1.bf16.msra.mxu0 0
      %944 = vmatprep.subr.bf16.mxu0 0
      %945 = vmatpush1.bf16.msra.mxu0 0
      %946 = vmatprep.subr.bf16.mxu0 0
      %947 = vmatpush1.bf16.msra.mxu0 0
      %948 = vmatprep.subr.bf16.mxu0 0
      %949 = vmatpush1.bf16.msra.mxu0 0
      %950 = vmatprep.subr.bf16.mxu0 0
      %951 = vmatpush1.bf16.msra.mxu0 0
      %952 = vmatprep.subr.bf16.mxu0 0
      %953 = vmatpush1.bf16.msra.mxu0 0
      %954 = vmatprep.subr.bf16.mxu0 0
      %955 = vmatpush1.bf16.msra.mxu0 0
      %956 = vmatprep.subr.bf16.mxu0 0
      %957 = vmatpush1.bf16.msra.mxu0 %v940
      %958 = vmatprep.subr.bf16.mxu0 0
      %959 = vmatpush2.bf16.msra.mxu0 0
      %960 = vmatprep.subr.bf16.mxu0 0
      %961 = vmatpush2.bf16.msra.mxu0 0
      %962 = vmatprep.subr.bf16.mxu0 0
      %963 = vmatpush2.bf16.msra.mxu0 0
      %964 = vmatprep.subr.bf16.mxu0 0
      %965 = vmatpush2.bf16.msra.mxu0 0
      %966 = vmatprep.subr.bf16.mxu0 0
      %967 = vmatpush2.bf16.msra.mxu0 0
      %968 = vmatprep.subr.bf16.mxu0 0
      %969 = vmatpush2.bf16.msra.mxu0 0
      %970 = vmatprep.subr.bf16.mxu0 0
      %971 = vmatpush2.bf16.msra.mxu0 0
      %972 = vmatprep.subr.bf16.mxu0 0
      %973 = vmatpush2.bf16.msra.mxu0 0
      %974 = vmatprep.mubr.bf16.mxu0 0
      %975 = vmatmul.mubr.bf16.gmra.mxu0 %v937
      %v976 = vpop.f32.mrf.mxu0
      %v977 = vadd.f32 0.0, %v976
      %v978 = vpop.f32.mrf.mxu0
      %v979 = vpop.f32.mrf.mxu0
      %v980 = vpop.f32.mrf.mxu0
      %981 = vdwg.mxu0
      %v983 = vsel %vm704, %v678, 0
      %v986 = vsel %vm708, %v694, 0
      %988 = vmatprep.subr.bf16.mxu0 0
      %989 = vmatpush1.bf16.msra.mxu0 0
      %990 = vmatprep.subr.bf16.mxu0 0
      %991 = vmatpush1.bf16.msra.mxu0 0
      %992 = vmatprep.subr.bf16.mxu0 0
      %993 = vmatpush1.bf16.msra.mxu0 0
      %994 = vmatprep.subr.bf16.mxu0 0
      %995 = vmatpush1.bf16.msra.mxu0 0
      %996 = vmatprep.subr.bf16.mxu0 0
      %997 = vmatpush1.bf16.msra.mxu0 0
      %998 = vmatprep.subr.bf16.mxu0 0
      %999 = vmatpush1.bf16.msra.mxu0 0
      %1000 = vmatprep.subr.bf16.mxu0 0
      %1001 = vmatpush1.bf16.msra.mxu0 0
      %1002 = vmatprep.subr.bf16.mxu0 0
      %1003 = vmatpush1.bf16.msra.mxu0 %v986
      %1004 = vmatprep.subr.bf16.mxu0 0
      %1005 = vmatpush2.bf16.msra.mxu0 0
      %1006 = vmatprep.subr.bf16.mxu0 0
      %1007 = vmatpush2.bf16.msra.mxu0 0
      %1008 = vmatprep.subr.bf16.mxu0 0
      %1009 = vmatpush2.bf16.msra.mxu0 0
      %1010 = vmatprep.subr.bf16.mxu0 0
      %1011 = vmatpush2.bf16.msra.mxu0 0
      %1012 = vmatprep.subr.bf16.mxu0 0
      %1013 = vmatpush2.bf16.msra.mxu0 0
      %1014 = vmatprep.subr.bf16.mxu0 0
      %1015 = vmatpush2.bf16.msra.mxu0 0
      %1016 = vmatprep.subr.bf16.mxu0 0
      %1017 = vmatpush2.bf16.msra.mxu0 0
      %1018 = vmatprep.subr.bf16.mxu0 0
      %1019 = vmatpush2.bf16.msra.mxu0 0
      %1020 = vmatprep.mubr.bf16.mxu0 0
      %1021 = vmatmul.mubr.bf16.gmra.mxu0 %v983
      %v1022 = vpop.f32.mrf.mxu0
      %v1023 = vadd.f32 0.0, %v1022
      %v1024 = vpop.f32.mrf.mxu0
      %v1025 = vpop.f32.mrf.mxu0
      %v1026 = vpop.f32.mrf.mxu0
      %1027 = vdwg.mxu0
      %v1029 = vsel %vm704, %v679, 0
      %v1032 = vsel %vm708, %v695, 0
      %1034 = vmatprep.subr.bf16.mxu0 0
      %1035 = vmatpush1.bf16.msra.mxu0 0
      %1036 = vmatprep.subr.bf16.mxu0 0
      %1037 = vmatpush1.bf16.msra.mxu0 0
      %1038 = vmatprep.subr.bf16.mxu0 0
      %1039 = vmatpush1.bf16.msra.mxu0 0
      %1040 = vmatprep.subr.bf16.mxu0 0
      %1041 = vmatpush1.bf16.msra.mxu0 0
      %1042 = vmatprep.subr.bf16.mxu0 0
      %1043 = vmatpush1.bf16.msra.mxu0 0
      %1044 = vmatprep.subr.bf16.mxu0 0
      %1045 = vmatpush1.bf16.msra.mxu0 0
      %1046 = vmatprep.subr.bf16.mxu0 0
      %1047 = vmatpush1.bf16.msra.mxu0 0
      %1048 = vmatprep.subr.bf16.mxu0 0
      %1049 = vmatpush1.bf16.msra.mxu0 %v1032
      %1050 = vmatprep.subr.bf16.mxu0 0
      %1051 = vmatpush2.bf16.msra.mxu0 0
      %1052 = vmatprep.subr.bf16.mxu0 0
      %1053 = vmatpush2.bf16.msra.mxu0 0
      %1054 = vmatprep.subr.bf16.mxu0 0
      %1055 = vmatpush2.bf16.msra.mxu0 0
      %1056 = vmatprep.subr.bf16.mxu0 0
      %1057 = vmatpush2.bf16.msra.mxu0 0
      %1058 = vmatprep.subr.bf16.mxu0 0
      %1059 = vmatpush2.bf16.msra.mxu0 0
      %1060 = vmatprep.subr.bf16.mxu0 0
      %1061 = vmatpush2.bf16.msra.mxu0 0
      %1062 = vmatprep.subr.bf16.mxu0 0
      %1063 = vmatpush2.bf16.msra.mxu0 0
      %1064 = vmatprep.subr.bf16.mxu0 0
      %1065 = vmatpush2.bf16.msra.mxu0 0
      %1066 = vmatprep.mubr.bf16.mxu0 0
      %1067 = vmatmul.mubr.bf16.gmra.mxu0 %v1029
      %v1068 = vpop.f32.mrf.mxu0
      %v1069 = vadd.f32 0.0, %v1068
      %v1070 = vpop.f32.mrf.mxu0
      %v1071 = vpop.f32.mrf.mxu0
      %v1072 = vpop.f32.mrf.mxu0
      %1073 = vdwg.mxu0
      %v1075 = vsel %vm704, %v680, 0
      %v1078 = vsel %vm708, %v696, 0
      %1080 = vmatprep.subr.bf16.mxu0 0
      %1081 = vmatpush1.bf16.msra.mxu0 0
      %1082 = vmatprep.subr.bf16.mxu0 0
      %1083 = vmatpush1.bf16.msra.mxu0 0
      %1084 = vmatprep.subr.bf16.mxu0 0
      %1085 = vmatpush1.bf16.msra.mxu0 0
      %1086 = vmatprep.subr.bf16.mxu0 0
      %1087 = vmatpush1.bf16.msra.mxu0 0
      %1088 = vmatprep.subr.bf16.mxu0 0
      %1089 = vmatpush1.bf16.msra.mxu0 0
      %1090 = vmatprep.subr.bf16.mxu0 0
      %1091 = vmatpush1.bf16.msra.mxu0 0
      %1092 = vmatprep.subr.bf16.mxu0 0
      %1093 = vmatpush1.bf16.msra.mxu0 0
      %1094 = vmatprep.subr.bf16.mxu0 0
      %1095 = vmatpush1.bf16.msra.mxu0 %v1078
      %1096 = vmatprep.subr.bf16.mxu0 0
      %1097 = vmatpush2.bf16.msra.mxu0 0
      %1098 = vmatprep.subr.bf16.mxu0 0
      %1099 = vmatpush2.bf16.msra.mxu0 0
      %1100 = vmatprep.subr.bf16.mxu0 0
      %1101 = vmatpush2.bf16.msra.mxu0 0
      %1102 = vmatprep.subr.bf16.mxu0 0
      %1103 = vmatpush2.bf16.msra.mxu0 0
      %1104 = vmatprep.subr.bf16.mxu0 0
      %1105 = vmatpush2.bf16.msra.mxu0 0
      %1106 = vmatprep.subr.bf16.mxu0 0
      %1107 = vmatpush2.bf16.msra.mxu0 0
      %1108 = vmatprep.subr.bf16.mxu0 0
      %1109 = vmatpush2.bf16.msra.mxu0 0
      %1110 = vmatprep.subr.bf16.mxu0 0
      %1111 = vmatpush2.bf16.msra.mxu0 0
      %1112 = vmatprep.mubr.bf16.mxu0 0
      %1113 = vmatmul.mubr.bf16.gmra.mxu0 %v1075
      %v1114 = vpop.f32.mrf.mxu0
      %v1115 = vadd.f32 0.0, %v1114
      %v1116 = vpop.f32.mrf.mxu0
      %v1117 = vpop.f32.mrf.mxu0
      %v1118 = vpop.f32.mrf.mxu0
      %1119 = vdwg.mxu0
      %v1121 = vsel %vm704, %v681, 0
      %v1124 = vsel %vm708, %v697, 0
      %1126 = vmatprep.subr.bf16.mxu0 0
      %1127 = vmatpush1.bf16.msra.mxu0 0
      %1128 = vmatprep.subr.bf16.mxu0 0
      %1129 = vmatpush1.bf16.msra.mxu0 0
      %1130 = vmatprep.subr.bf16.mxu0 0
      %1131 = vmatpush1.bf16.msra.mxu0 0
      %1132 = vmatprep.subr.bf16.mxu0 0
      %1133 = vmatpush1.bf16.msra.mxu0 0
      %1134 = vmatprep.subr.bf16.mxu0 0
      %1135 = vmatpush1.bf16.msra.mxu0 0
      %1136 = vmatprep.subr.bf16.mxu0 0
      %1137 = vmatpush1.bf16.msra.mxu0 0
      %1138 = vmatprep.subr.bf16.mxu0 0
      %1139 = vmatpush1.bf16.msra.mxu0 0
      %1140 = vmatprep.subr.bf16.mxu0 0
      %1141 = vmatpush1.bf16.msra.mxu0 %v1124
      %1142 = vmatprep.subr.bf16.mxu0 0
      %1143 = vmatpush2.bf16.msra.mxu0 0
      %1144 = vmatprep.subr.bf16.mxu0 0
      %1145 = vmatpush2.bf16.msra.mxu0 0
      %1146 = vmatprep.subr.bf16.mxu0 0
      %1147 = vmatpush2.bf16.msra.mxu0 0
      %1148 = vmatprep.subr.bf16.mxu0 0
      %1149 = vmatpush2.bf16.msra.mxu0 0
      %1150 = vmatprep.subr.bf16.mxu0 0
      %1151 = vmatpush2.bf16.msra.mxu0 0
      %1152 = vmatprep.subr.bf16.mxu0 0
      %1153 = vmatpush2.bf16.msra.mxu0 0
      %1154 = vmatprep.subr.bf16.mxu0 0
      %1155 = vmatpush2.bf16.msra.mxu0 0
      %1156 = vmatprep.subr.bf16.mxu0 0
      %1157 = vmatpush2.bf16.msra.mxu0 0
      %1158 = vmatprep.mubr.bf16.mxu0 0
      %1159 = vmatmul.mubr.bf16.gmra.mxu0 %v1121
      %v1160 = vpop.f32.mrf.mxu0
      %v1161 = vadd.f32 0.0, %v1160
      %v1162 = vpop.f32.mrf.mxu0
      %v1163 = vpop.f32.mrf.mxu0
      %v1164 = vpop.f32.mrf.mxu0
      %1165 = vdwg.mxu0
      %v1167 = vsel %vm704, %v682, 0
      %v1170 = vsel %vm708, %v698, 0
      %1172 = vmatprep.subr.bf16.mxu0 0
      %1173 = vmatpush1.bf16.msra.mxu0 0
      %1174 = vmatprep.subr.bf16.mxu0 0
      %1175 = vmatpush1.bf16.msra.mxu0 0
      %1176 = vmatprep.subr.bf16.mxu0 0
      %1177 = vmatpush1.bf16.msra.mxu0 0
      %1178 = vmatprep.subr.bf16.mxu0 0
      %1179 = vmatpush1.bf16.msra.mxu0 0
      %1180 = vmatprep.subr.bf16.mxu0 0
      %1181 = vmatpush1.bf16.msra.mxu0 0
      %1182 = vmatprep.subr.bf16.mxu0 0
      %1183 = vmatpush1.bf16.msra.mxu0 0
      %1184 = vmatprep.subr.bf16.mxu0 0
      %1185 = vmatpush1.bf16.msra.mxu0 0
      %1186 = vmatprep.subr.bf16.mxu0 0
      %1187 = vmatpush1.bf16.msra.mxu0 %v1170
      %1188 = vmatprep.subr.bf16.mxu0 0
      %1189 = vmatpush2.bf16.msra.mxu0 0
      %1190 = vmatprep.subr.bf16.mxu0 0
      %1191 = vmatpush2.bf16.msra.mxu0 0
      %1192 = vmatprep.subr.bf16.mxu0 0
      %1193 = vmatpush2.bf16.msra.mxu0 0
      %1194 = vmatprep.subr.bf16.mxu0 0
      %1195 = vmatpush2.bf16.msra.mxu0 0
      %1196 = vmatprep.subr.bf16.mxu0 0
      %1197 = vmatpush2.bf16.msra.mxu0 0
      %1198 = vmatprep.subr.bf16.mxu0 0
      %1199 = vmatpush2.bf16.msra.mxu0 0
      %1200 = vmatprep.subr.bf16.mxu0 0
      %1201 = vmatpush2.bf16.msra.mxu0 0
      %1202 = vmatprep.subr.bf16.mxu0 0
      %1203 = vmatpush2.bf16.msra.mxu0 0
      %1204 = vmatprep.mubr.bf16.mxu0 0
      %1205 = vmatmul.mubr.bf16.gmra.mxu0 %v1167
      %v1206 = vpop.f32.mrf.mxu0
      %v1207 = vadd.f32 0.0, %v1206
      %v1208 = vpop.f32.mrf.mxu0
      %v1209 = vpop.f32.mrf.mxu0
      %v1210 = vpop.f32.mrf.mxu0
      %1211 = vdwg.mxu0
      %v1213 = vsel %vm704, %v683, 0
      %v1216 = vsel %vm708, %v699, 0
      %1218 = vmatprep.subr.bf16.mxu0 0
      %1219 = vmatpush1.bf16.msra.mxu0 0
      %1220 = vmatprep.subr.bf16.mxu0 0
      %1221 = vmatpush1.bf16.msra.mxu0 0
      %1222 = vmatprep.subr.bf16.mxu0 0
      %1223 = vmatpush1.bf16.msra.mxu0 0
      %1224 = vmatprep.subr.bf16.mxu0 0
      %1225 = vmatpush1.bf16.msra.mxu0 0
      %1226 = vmatprep.subr.bf16.mxu0 0
      %1227 = vmatpush1.bf16.msra.mxu0 0
      %1228 = vmatprep.subr.bf16.mxu0 0
      %1229 = vmatpush1.bf16.msra.mxu0 0
      %1230 = vmatprep.subr.bf16.mxu0 0
      %1231 = vmatpush1.bf16.msra.mxu0 0
      %1232 = vmatprep.subr.bf16.mxu0 0
      %1233 = vmatpush1.bf16.msra.mxu0 %v1216
      %1234 = vmatprep.subr.bf16.mxu0 0
      %1235 = vmatpush2.bf16.msra.mxu0 0
      %1236 = vmatprep.subr.bf16.mxu0 0
      %1237 = vmatpush2.bf16.msra.mxu0 0
      %1238 = vmatprep.subr.bf16.mxu0 0
      %1239 = vmatpush2.bf16.msra.mxu0 0
      %1240 = vmatprep.subr.bf16.mxu0 0
      %1241 = vmatpush2.bf16.msra.mxu0 0
      %1242 = vmatprep.subr.bf16.mxu0 0
      %1243 = vmatpush2.bf16.msra.mxu0 0
      %1244 = vmatprep.subr.bf16.mxu0 0
      %1245 = vmatpush2.bf16.msra.mxu0 0
      %1246 = vmatprep.subr.bf16.mxu0 0
      %1247 = vmatpush2.bf16.msra.mxu0 0
      %1248 = vmatprep.subr.bf16.mxu0 0
      %1249 = vmatpush2.bf16.msra.mxu0 0
      %1250 = vmatprep.mubr.bf16.mxu0 0
      %1251 = vmatmul.mubr.bf16.gmra.mxu0 %v1213
      %v1252 = vpop.f32.mrf.mxu0
      %v1253 = vadd.f32 0.0, %v1252
      %v1254 = vpop.f32.mrf.mxu0
      %v1255 = vpop.f32.mrf.mxu0
      %v1256 = vpop.f32.mrf.mxu0
      %1257 = vdwg.mxu0
      %v1259 = vsel %vm704, %v684, 0
      %v1262 = vsel %vm708, %v700, 0
      %1264 = vmatprep.subr.bf16.mxu0 0
      %1265 = vmatpush1.bf16.msra.mxu0 0
      %1266 = vmatprep.subr.bf16.mxu0 0
      %1267 = vmatpush1.bf16.msra.mxu0 0
      %1268 = vmatprep.subr.bf16.mxu0 0
      %1269 = vmatpush1.bf16.msra.mxu0 0
      %1270 = vmatprep.subr.bf16.mxu0 0
      %1271 = vmatpush1.bf16.msra.mxu0 0
      %1272 = vmatprep.subr.bf16.mxu0 0
      %1273 = vmatpush1.bf16.msra.mxu0 0
      %1274 = vmatprep.subr.bf16.mxu0 0
      %1275 = vmatpush1.bf16.msra.mxu0 0
      %1276 = vmatprep.subr.bf16.mxu0 0
      %1277 = vmatpush1.bf16.msra.mxu0 0
      %1278 = vmatprep.subr.bf16.mxu0 0
      %1279 = vmatpush1.bf16.msra.mxu0 %v1262
      %1280 = vmatprep.subr.bf16.mxu0 0
      %1281 = vmatpush2.bf16.msra.mxu0 0
      %1282 = vmatprep.subr.bf16.mxu0 0
      %1283 = vmatpush2.bf16.msra.mxu0 0
      %1284 = vmatprep.subr.bf16.mxu0 0
      %1285 = vmatpush2.bf16.msra.mxu0 0
      %1286 = vmatprep.subr.bf16.mxu0 0
      %1287 = vmatpush2.bf16.msra.mxu0 0
      %1288 = vmatprep.subr.bf16.mxu0 0
      %1289 = vmatpush2.bf16.msra.mxu0 0
      %1290 = vmatprep.subr.bf16.mxu0 0
      %1291 = vmatpush2.bf16.msra.mxu0 0
      %1292 = vmatprep.subr.bf16.mxu0 0
      %1293 = vmatpush2.bf16.msra.mxu0 0
      %1294 = vmatprep.subr.bf16.mxu0 0
      %1295 = vmatpush2.bf16.msra.mxu0 0
      %1296 = vmatprep.mubr.bf16.mxu0 0
      %1297 = vmatmul.mubr.bf16.gmra.mxu0 %v1259
      %v1298 = vpop.f32.mrf.mxu0
      %v1299 = vadd.f32 0.0, %v1298
      %v1300 = vpop.f32.mrf.mxu0
      %v1301 = vpop.f32.mrf.mxu0
      %v1302 = vpop.f32.mrf.mxu0
      %1303 = vdwg.mxu0
      %v1305 = vsel %vm704, %v685, 0
      %v1308 = vsel %vm708, %v701, 0
      %1310 = vmatprep.subr.bf16.mxu0 0
      %1311 = vmatpush1.bf16.msra.mxu0 0
      %1312 = vmatprep.subr.bf16.mxu0 0
      %1313 = vmatpush1.bf16.msra.mxu0 0
      %1314 = vmatprep.subr.bf16.mxu0 0
      %1315 = vmatpush1.bf16.msra.mxu0 0
      %1316 = vmatprep.subr.bf16.mxu0 0
      %1317 = vmatpush1.bf16.msra.mxu0 0
      %1318 = vmatprep.subr.bf16.mxu0 0
      %1319 = vmatpush1.bf16.msra.mxu0 0
      %1320 = vmatprep.subr.bf16.mxu0 0
      %1321 = vmatpush1.bf16.msra.mxu0 0
      %1322 = vmatprep.subr.bf16.mxu0 0
      %1323 = vmatpush1.bf16.msra.mxu0 0
      %1324 = vmatprep.subr.bf16.mxu0 0
      %1325 = vmatpush1.bf16.msra.mxu0 %v1308
      %1326 = vmatprep.subr.bf16.mxu0 0
      %1327 = vmatpush2.bf16.msra.mxu0 0
      %1328 = vmatprep.subr.bf16.mxu0 0
      %1329 = vmatpush2.bf16.msra.mxu0 0
      %1330 = vmatprep.subr.bf16.mxu0 0
      %1331 = vmatpush2.bf16.msra.mxu0 0
      %1332 = vmatprep.subr.bf16.mxu0 0
      %1333 = vmatpush2.bf16.msra.mxu0 0
      %1334 = vmatprep.subr.bf16.mxu0 0
      %1335 = vmatpush2.bf16.msra.mxu0 0
      %1336 = vmatprep.subr.bf16.mxu0 0
      %1337 = vmatpush2.bf16.msra.mxu0 0
      %1338 = vmatprep.subr.bf16.mxu0 0
      %1339 = vmatpush2.bf16.msra.mxu0 0
      %1340 = vmatprep.subr.bf16.mxu0 0
      %1341 = vmatpush2.bf16.msra.mxu0 0
      %1342 = vmatprep.mubr.bf16.mxu0 0
      %1343 = vmatmul.mubr.bf16.gmra.mxu0 %v1305
      %v1344 = vpop.f32.mrf.mxu0
      %v1345 = vadd.f32 0.0, %v1344
      %v1346 = vpop.f32.mrf.mxu0
      %v1347 = vpop.f32.mrf.mxu0
      %v1348 = vpop.f32.mrf.mxu0
      %1349 = vdwg.mxu0
      %v1351 = vsel %vm704, %v686, 0
      %v1354 = vsel %vm708, %v702, 0
      %1356 = vmatprep.subr.bf16.mxu0 0
      %1357 = vmatpush1.bf16.msra.mxu0 0
      %1358 = vmatprep.subr.bf16.mxu0 0
      %1359 = vmatpush1.bf16.msra.mxu0 0
      %1360 = vmatprep.subr.bf16.mxu0 0
      %1361 = vmatpush1.bf16.msra.mxu0 0
      %1362 = vmatprep.subr.bf16.mxu0 0
      %1363 = vmatpush1.bf16.msra.mxu0 0
      %1364 = vmatprep.subr.bf16.mxu0 0
      %1365 = vmatpush1.bf16.msra.mxu0 0
      %1366 = vmatprep.subr.bf16.mxu0 0
      %1367 = vmatpush1.bf16.msra.mxu0 0
      %1368 = vmatprep.subr.bf16.mxu0 0
      %1369 = vmatpush1.bf16.msra.mxu0 0
      %1370 = vmatprep.subr.bf16.mxu0 0
      %1371 = vmatpush1.bf16.msra.mxu0 %v1354
      %1372 = vmatprep.subr.bf16.mxu0 0
      %1373 = vmatpush2.bf16.msra.mxu0 0
      %1374 = vmatprep.subr.bf16.mxu0 0
      %1375 = vmatpush2.bf16.msra.mxu0 0
      %1376 = vmatprep.subr.bf16.mxu0 0
      %1377 = vmatpush2.bf16.msra.mxu0 0
      %1378 = vmatprep.subr.bf16.mxu0 0
      %1379 = vmatpush2.bf16.msra.mxu0 0
      %1380 = vmatprep.subr.bf16.mxu0 0
      %1381 = vmatpush2.bf16.msra.mxu0 0
      %1382 = vmatprep.subr.bf16.mxu0 0
      %1383 = vmatpush2.bf16.msra.mxu0 0
      %1384 = vmatprep.subr.bf16.mxu0 0
      %1385 = vmatpush2.bf16.msra.mxu0 0
      %1386 = vmatprep.subr.bf16.mxu0 0
      %1387 = vmatpush2.bf16.msra.mxu0 0
      %1388 = vmatprep.mubr.bf16.mxu0 0
      %1389 = vmatmul.mubr.bf16.gmra.mxu0 %v1351
      %v1390 = vpop.f32.mrf.mxu0
      %v1391 = vadd.f32 0.0, %v1390
      %v1392 = vpop.f32.mrf.mxu0
      %v1393 = vpop.f32.mrf.mxu0
      %v1394 = vpop.f32.mrf.mxu0
      %1395 = vdwg.mxu0
      %v1397 = vsel %vm704, %v687, 0
      %v1400 = vsel %vm708, %v703, 0
      %1402 = vmatprep.subr.bf16.mxu0 0
      %1403 = vmatpush1.bf16.msra.mxu0 0
      %1404 = vmatprep.subr.bf16.mxu0 0
      %1405 = vmatpush1.bf16.msra.mxu0 0
      %1406 = vmatprep.subr.bf16.mxu0 0
      %1407 = vmatpush1.bf16.msra.mxu0 0
      %1408 = vmatprep.subr.bf16.mxu0 0
      %1409 = vmatpush1.bf16.msra.mxu0 0
      %1410 = vmatprep.subr.bf16.mxu0 0
      %1411 = vmatpush1.bf16.msra.mxu0 0
      %1412 = vmatprep.subr.bf16.mxu0 0
      %1413 = vmatpush1.bf16.msra.mxu0 0
      %1414 = vmatprep.subr.bf16.mxu0 0
      %1415 = vmatpush1.bf16.msra.mxu0 0
      %1416 = vmatprep.subr.bf16.mxu0 0
      %1417 = vmatpush1.bf16.msra.mxu0 %v1400
      %1418 = vmatprep.subr.bf16.mxu0 0
      %1419 = vmatpush2.bf16.msra.mxu0 0
      %1420 = vmatprep.subr.bf16.mxu0 0
      %1421 = vmatpush2.bf16.msra.mxu0 0
      %1422 = vmatprep.subr.bf16.mxu0 0
      %1423 = vmatpush2.bf16.msra.mxu0 0
      %1424 = vmatprep.subr.bf16.mxu0 0
      %1425 = vmatpush2.bf16.msra.mxu0 0
      %1426 = vmatprep.subr.bf16.mxu0 0
      %1427 = vmatpush2.bf16.msra.mxu0 0
      %1428 = vmatprep.subr.bf16.mxu0 0
      %1429 = vmatpush2.bf16.msra.mxu0 0
      %1430 = vmatprep.subr.bf16.mxu0 0
      %1431 = vmatpush2.bf16.msra.mxu0 0
      %1432 = vmatprep.subr.bf16.mxu0 0
      %1433 = vmatpush2.bf16.msra.mxu0 0
      %1434 = vmatprep.mubr.bf16.mxu0 0
      %1435 = vmatmul.mubr.bf16.gmra.mxu0 %v1397
      %v1436 = vpop.f32.mrf.mxu0
      %v1437 = vadd.f32 0.0, %v1436
      %v1438 = vpop.f32.mrf.mxu0
      %v1439 = vpop.f32.mrf.mxu0
      %v1440 = vpop.f32.mrf.mxu0
      %1441 = vdwg.mxu0
      %1442 = vmatprep.subr.bf16.mxu0 0
      %1443 = vmatpush1.bf16.msra.mxu0 0
      %1444 = vmatprep.subr.bf16.mxu0 0
      %1445 = vmatpush1.bf16.msra.mxu0 0
      %1446 = vmatprep.subr.bf16.mxu0 0
      %1447 = vmatpush1.bf16.msra.mxu0 0
      %1448 = vmatprep.subr.bf16.mxu0 0
      %1449 = vmatpush1.bf16.msra.mxu0 0
      %1450 = vmatprep.subr.bf16.mxu0 0
      %1451 = vmatpush1.bf16.msra.mxu0 0
      %1452 = vmatprep.subr.bf16.mxu0 0
      %1453 = vmatpush1.bf16.msra.mxu0 0
      %1454 = vmatprep.subr.bf16.mxu0 0
      %1455 = vmatpush1.bf16.msra.mxu0 0
      %1456 = vmatprep.subr.bf16.mxu0 0
      %1457 = vmatpush1.bf16.msra.mxu0 %v710
      %1458 = vmatprep.subr.bf16.mxu0 0
      %1459 = vmatpush2.bf16.msra.mxu0 0
      %1460 = vmatprep.subr.bf16.mxu0 0
      %1461 = vmatpush2.bf16.msra.mxu0 0
      %1462 = vmatprep.subr.bf16.mxu0 0
      %1463 = vmatpush2.bf16.msra.mxu0 0
      %1464 = vmatprep.subr.bf16.mxu0 0
      %1465 = vmatpush2.bf16.msra.mxu0 0
      %1466 = vmatprep.subr.bf16.mxu0 0
      %1467 = vmatpush2.bf16.msra.mxu0 0
      %1468 = vmatprep.subr.bf16.mxu0 0
      %1469 = vmatpush2.bf16.msra.mxu0 0
      %1470 = vmatprep.subr.bf16.mxu0 0
      %1471 = vmatpush2.bf16.msra.mxu0 0
      %1472 = vmatprep.subr.bf16.mxu0 0
      %1473 = vmatpush2.bf16.msra.mxu0 0
      %1474 = vmatprep.mubr.bf16.mxu0 0
      %1475 = vmatmul.mubr.bf16.gmra.mxu0 %v1075
      %v1476 = vpop.f32.mrf.mxu0
      %v1477 = vadd.f32 0.0, %v1476
      %v1478 = vpop.f32.mrf.mxu0
      %v1479 = vpop.f32.mrf.mxu0
      %v1480 = vpop.f32.mrf.mxu0
      %1481 = vdwg.mxu0
      %1482 = vmatprep.subr.bf16.mxu0 0
      %1483 = vmatpush1.bf16.msra.mxu0 0
      %1484 = vmatprep.subr.bf16.mxu0 0
      %1485 = vmatpush1.bf16.msra.mxu0 0
      %1486 = vmatprep.subr.bf16.mxu0 0
      %1487 = vmatpush1.bf16.msra.mxu0 0
      %1488 = vmatprep.subr.bf16.mxu0 0
      %1489 = vmatpush1.bf16.msra.mxu0 0
      %1490 = vmatprep.subr.bf16.mxu0 0
      %1491 = vmatpush1.bf16.msra.mxu0 0
      %1492 = vmatprep.subr.bf16.mxu0 0
      %1493 = vmatpush1.bf16.msra.mxu0 0
      %1494 = vmatprep.subr.bf16.mxu0 0
      %1495 = vmatpush1.bf16.msra.mxu0 0
      %1496 = vmatprep.subr.bf16.mxu0 0
      %1497 = vmatpush1.bf16.msra.mxu0 %v756
      %1498 = vmatprep.subr.bf16.mxu0 0
      %1499 = vmatpush2.bf16.msra.mxu0 0
      %1500 = vmatprep.subr.bf16.mxu0 0
      %1501 = vmatpush2.bf16.msra.mxu0 0
      %1502 = vmatprep.subr.bf16.mxu0 0
      %1503 = vmatpush2.bf16.msra.mxu0 0
      %1504 = vmatprep.subr.bf16.mxu0 0
      %1505 = vmatpush2.bf16.msra.mxu0 0
      %1506 = vmatprep.subr.bf16.mxu0 0
      %1507 = vmatpush2.bf16.msra.mxu0 0
      %1508 = vmatprep.subr.bf16.mxu0 0
      %1509 = vmatpush2.bf16.msra.mxu0 0
      %1510 = vmatprep.subr.bf16.mxu0 0
      %1511 = vmatpush2.bf16.msra.mxu0 0
      %1512 = vmatprep.subr.bf16.mxu0 0
      %1513 = vmatpush2.bf16.msra.mxu0 0
      %1514 = vmatprep.mubr.bf16.mxu0 0
      %1515 = vmatmul.mubr.bf16.gmra.mxu0 %v1121
      %v1516 = vpop.f32.mrf.mxu0
      %v1517 = vadd.f32 0.0, %v1516
      %v1518 = vpop.f32.mrf.mxu0
      %v1519 = vpop.f32.mrf.mxu0
      %v1520 = vpop.f32.mrf.mxu0
      %1521 = vdwg.mxu0
      %1522 = vmatprep.subr.bf16.mxu0 0
      %1523 = vmatpush1.bf16.msra.mxu0 0
      %1524 = vmatprep.subr.bf16.mxu0 0
      %1525 = vmatpush1.bf16.msra.mxu0 0
      %1526 = vmatprep.subr.bf16.mxu0 0
      %1527 = vmatpush1.bf16.msra.mxu0 0
      %1528 = vmatprep.subr.bf16.mxu0 0
      %1529 = vmatpush1.bf16.msra.mxu0 0
      %1530 = vmatprep.subr.bf16.mxu0 0
      %1531 = vmatpush1.bf16.msra.mxu0 0
      %1532 = vmatprep.subr.bf16.mxu0 0
      %1533 = vmatpush1.bf16.msra.mxu0 0
      %1534 = vmatprep.subr.bf16.mxu0 0
      %1535 = vmatpush1.bf16.msra.mxu0 0
      %1536 = vmatprep.subr.bf16.mxu0 0
      %1537 = vmatpush1.bf16.msra.mxu0 %v802
      %1538 = vmatprep.subr.bf16.mxu0 0
      %1539 = vmatpush2.bf16.msra.mxu0 0
      %1540 = vmatprep.subr.bf16.mxu0 0
      %1541 = vmatpush2.bf16.msra.mxu0 0
      %1542 = vmatprep.subr.bf16.mxu0 0
      %1543 = vmatpush2.bf16.msra.mxu0 0
      %1544 = vmatprep.subr.bf16.mxu0 0
      %1545 = vmatpush2.bf16.msra.mxu0 0
      %1546 = vmatprep.subr.bf16.mxu0 0
      %1547 = vmatpush2.bf16.msra.mxu0 0
      %1548 = vmatprep.subr.bf16.mxu0 0
      %1549 = vmatpush2.bf16.msra.mxu0 0
      %1550 = vmatprep.subr.bf16.mxu0 0
      %1551 = vmatpush2.bf16.msra.mxu0 0
      %1552 = vmatprep.subr.bf16.mxu0 0
      %1553 = vmatpush2.bf16.msra.mxu0 0
      %1554 = vmatprep.mubr.bf16.mxu0 0
      %1555 = vmatmul.mubr.bf16.gmra.mxu0 %v1167
      %v1556 = vpop.f32.mrf.mxu0
      %v1557 = vadd.f32 0.0, %v1556
      %v1558 = vpop.f32.mrf.mxu0
      %v1559 = vpop.f32.mrf.mxu0
      %v1560 = vpop.f32.mrf.mxu0
      %1561 = vdwg.mxu0
      %1562 = vmatprep.subr.bf16.mxu0 0
      %1563 = vmatpush1.bf16.msra.mxu0 0
      %1564 = vmatprep.subr.bf16.mxu0 0
      %1565 = vmatpush1.bf16.msra.mxu0 0
      %1566 = vmatprep.subr.bf16.mxu0 0
      %1567 = vmatpush1.bf16.msra.mxu0 0
      %1568 = vmatprep.subr.bf16.mxu0 0
      %1569 = vmatpush1.bf16.msra.mxu0 0
      %1570 = vmatprep.subr.bf16.mxu0 0
      %1571 = vmatpush1.bf16.msra.mxu0 0
      %1572 = vmatprep.subr.bf16.mxu0 0
      %1573 = vmatpush1.bf16.msra.mxu0 0
      %1574 = vmatprep.subr.bf16.mxu0 0
      %1575 = vmatpush1.bf16.msra.mxu0 0
      %1576 = vmatprep.subr.bf16.mxu0 0
      %1577 = vmatpush1.bf16.msra.mxu0 %v848
      %1578 = vmatprep.subr.bf16.mxu0 0
      %1579 = vmatpush2.bf16.msra.mxu0 0
      %1580 = vmatprep.subr.bf16.mxu0 0
      %1581 = vmatpush2.bf16.msra.mxu0 0
      %1582 = vmatprep.subr.bf16.mxu0 0
      %1583 = vmatpush2.bf16.msra.mxu0 0
      %1584 = vmatprep.subr.bf16.mxu0 0
      %1585 = vmatpush2.bf16.msra.mxu0 0
      %1586 = vmatprep.subr.bf16.mxu0 0
      %1587 = vmatpush2.bf16.msra.mxu0 0
      %1588 = vmatprep.subr.bf16.mxu0 0
      %1589 = vmatpush2.bf16.msra.mxu0 0
      %1590 = vmatprep.subr.bf16.mxu0 0
      %1591 = vmatpush2.bf16.msra.mxu0 0
      %1592 = vmatprep.subr.bf16.mxu0 0
      %1593 = vmatpush2.bf16.msra.mxu0 0
      %1594 = vmatprep.mubr.bf16.mxu0 0
      %1595 = vmatmul.mubr.bf16.gmra.mxu0 %v1213
      %v1596 = vpop.f32.mrf.mxu0
      %v1597 = vadd.f32 0.0, %v1596
      %v1598 = vpop.f32.mrf.mxu0
      %v1599 = vpop.f32.mrf.mxu0
      %v1600 = vpop.f32.mrf.mxu0
      %1601 = vdwg.mxu0
      %1602 = vmatprep.subr.bf16.mxu0 0
      %1603 = vmatpush1.bf16.msra.mxu0 0
      %1604 = vmatprep.subr.bf16.mxu0 0
      %1605 = vmatpush1.bf16.msra.mxu0 0
      %1606 = vmatprep.subr.bf16.mxu0 0
      %1607 = vmatpush1.bf16.msra.mxu0 0
      %1608 = vmatprep.subr.bf16.mxu0 0
      %1609 = vmatpush1.bf16.msra.mxu0 0
      %1610 = vmatprep.subr.bf16.mxu0 0
      %1611 = vmatpush1.bf16.msra.mxu0 0
      %1612 = vmatprep.subr.bf16.mxu0 0
      %1613 = vmatpush1.bf16.msra.mxu0 0
      %1614 = vmatprep.subr.bf16.mxu0 0
      %1615 = vmatpush1.bf16.msra.mxu0 0
      %1616 = vmatprep.subr.bf16.mxu0 0
      %1617 = vmatpush1.bf16.msra.mxu0 %v894
      %1618 = vmatprep.subr.bf16.mxu0 0
      %1619 = vmatpush2.bf16.msra.mxu0 0
      %1620 = vmatprep.subr.bf16.mxu0 0
      %1621 = vmatpush2.bf16.msra.mxu0 0
      %1622 = vmatprep.subr.bf16.mxu0 0
      %1623 = vmatpush2.bf16.msra.mxu0 0
      %1624 = vmatprep.subr.bf16.mxu0 0
      %1625 = vmatpush2.bf16.msra.mxu0 0
      %1626 = vmatprep.subr.bf16.mxu0 0
      %1627 = vmatpush2.bf16.msra.mxu0 0
      %1628 = vmatprep.subr.bf16.mxu0 0
      %1629 = vmatpush2.bf16.msra.mxu0 0
      %1630 = vmatprep.subr.bf16.mxu0 0
      %1631 = vmatpush2.bf16.msra.mxu0 0
      %1632 = vmatprep.subr.bf16.mxu0 0
      %1633 = vmatpush2.bf16.msra.mxu0 0
      %1634 = vmatprep.mubr.bf16.mxu0 0
      %1635 = vmatmul.mubr.bf16.gmra.mxu0 %v1259
      %v1636 = vpop.f32.mrf.mxu0
      %v1637 = vadd.f32 0.0, %v1636
      %v1638 = vpop.f32.mrf.mxu0
      %v1639 = vpop.f32.mrf.mxu0
      %v1640 = vpop.f32.mrf.mxu0
      %1641 = vdwg.mxu0
      %1642 = vmatprep.subr.bf16.mxu0 0
      %1643 = vmatpush1.bf16.msra.mxu0 0
      %1644 = vmatprep.subr.bf16.mxu0 0
      %1645 = vmatpush1.bf16.msra.mxu0 0
      %1646 = vmatprep.subr.bf16.mxu0 0
      %1647 = vmatpush1.bf16.msra.mxu0 0
      %1648 = vmatprep.subr.bf16.mxu0 0
      %1649 = vmatpush1.bf16.msra.mxu0 0
      %1650 = vmatprep.subr.bf16.mxu0 0
      %1651 = vmatpush1.bf16.msra.mxu0 0
      %1652 = vmatprep.subr.bf16.mxu0 0
      %1653 = vmatpush1.bf16.msra.mxu0 0
      %1654 = vmatprep.subr.bf16.mxu0 0
      %1655 = vmatpush1.bf16.msra.mxu0 0
      %1656 = vmatprep.subr.bf16.mxu0 0
      %1657 = vmatpush1.bf16.msra.mxu0 %v940
      %1658 = vmatprep.subr.bf16.mxu0 0
      %1659 = vmatpush2.bf16.msra.mxu0 0
      %1660 = vmatprep.subr.bf16.mxu0 0
      %1661 = vmatpush2.bf16.msra.mxu0 0
      %1662 = vmatprep.subr.bf16.mxu0 0
      %1663 = vmatpush2.bf16.msra.mxu0 0
      %1664 = vmatprep.subr.bf16.mxu0 0
      %1665 = vmatpush2.bf16.msra.mxu0 0
      %1666 = vmatprep.subr.bf16.mxu0 0
      %1667 = vmatpush2.bf16.msra.mxu0 0
      %1668 = vmatprep.subr.bf16.mxu0 0
      %1669 = vmatpush2.bf16.msra.mxu0 0
      %1670 = vmatprep.subr.bf16.mxu0 0
      %1671 = vmatpush2.bf16.msra.mxu0 0
      %1672 = vmatprep.subr.bf16.mxu0 0
      %1673 = vmatpush2.bf16.msra.mxu0 0
      %1674 = vmatprep.mubr.bf16.mxu0 0
      %1675 = vmatmul.mubr.bf16.gmra.mxu0 %v1305
      %v1676 = vpop.f32.mrf.mxu0
      %v1677 = vadd.f32 0.0, %v1676
      %v1678 = vpop.f32.mrf.mxu0
      %v1679 = vpop.f32.mrf.mxu0
      %v1680 = vpop.f32.mrf.mxu0
      %1681 = vdwg.mxu0
      %1682 = vmatprep.subr.bf16.mxu0 0
      %1683 = vmatpush1.bf16.msra.mxu0 0
      %1684 = vmatprep.subr.bf16.mxu0 0
      %1685 = vmatpush1.bf16.msra.mxu0 0
      %1686 = vmatprep.subr.bf16.mxu0 0
      %1687 = vmatpush1.bf16.msra.mxu0 0
      %1688 = vmatprep.subr.bf16.mxu0 0
      %1689 = vmatpush1.bf16.msra.mxu0 0
      %1690 = vmatprep.subr.bf16.mxu0 0
      %1691 = vmatpush1.bf16.msra.mxu0 0
      %1692 = vmatprep.subr.bf16.mxu0 0
      %1693 = vmatpush1.bf16.msra.mxu0 0
      %1694 = vmatprep.subr.bf16.mxu0 0
      %1695 = vmatpush1.bf16.msra.mxu0 0
      %1696 = vmatprep.subr.bf16.mxu0 0
      %1697 = vmatpush1.bf16.msra.mxu0 %v986
      %1698 = vmatprep.subr.bf16.mxu0 0
      %1699 = vmatpush2.bf16.msra.mxu0 0
      %1700 = vmatprep.subr.bf16.mxu0 0
      %1701 = vmatpush2.bf16.msra.mxu0 0
      %1702 = vmatprep.subr.bf16.mxu0 0
      %1703 = vmatpush2.bf16.msra.mxu0 0
      %1704 = vmatprep.subr.bf16.mxu0 0
      %1705 = vmatpush2.bf16.msra.mxu0 0
      %1706 = vmatprep.subr.bf16.mxu0 0
      %1707 = vmatpush2.bf16.msra.mxu0 0
      %1708 = vmatprep.subr.bf16.mxu0 0
      %1709 = vmatpush2.bf16.msra.mxu0 0
      %1710 = vmatprep.subr.bf16.mxu0 0
      %1711 = vmatpush2.bf16.msra.mxu0 0
      %1712 = vmatprep.subr.bf16.mxu0 0
      %1713 = vmatpush2.bf16.msra.mxu0 0
      %1714 = vmatprep.mubr.bf16.mxu0 0
      %1715 = vmatmul.mubr.bf16.gmra.mxu0 %v1351
      %v1716 = vpop.f32.mrf.mxu0
      %v1717 = vadd.f32 0.0, %v1716
      %v1718 = vpop.f32.mrf.mxu0
      %v1719 = vpop.f32.mrf.mxu0
      %v1720 = vpop.f32.mrf.mxu0
      %1721 = vdwg.mxu0
      %1722 = vmatprep.subr.bf16.mxu0 0
      %1723 = vmatpush1.bf16.msra.mxu0 0
      %1724 = vmatprep.subr.bf16.mxu0 0
      %1725 = vmatpush1.bf16.msra.mxu0 0
      %1726 = vmatprep.subr.bf16.mxu0 0
      %1727 = vmatpush1.bf16.msra.mxu0 0
      %1728 = vmatprep.subr.bf16.mxu0 0
      %1729 = vmatpush1.bf16.msra.mxu0 0
      %1730 = vmatprep.subr.bf16.mxu0 0
      %1731 = vmatpush1.bf16.msra.mxu0 0
      %1732 = vmatprep.subr.bf16.mxu0 0
      %1733 = vmatpush1.bf16.msra.mxu0 0
      %1734 = vmatprep.subr.bf16.mxu0 0
      %1735 = vmatpush1.bf16.msra.mxu0 0
      %1736 = vmatprep.subr.bf16.mxu0 0
      %1737 = vmatpush1.bf16.msra.mxu0 %v1032
      %1738 = vmatprep.subr.bf16.mxu0 0
      %1739 = vmatpush2.bf16.msra.mxu0 0
      %1740 = vmatprep.subr.bf16.mxu0 0
      %1741 = vmatpush2.bf16.msra.mxu0 0
      %1742 = vmatprep.subr.bf16.mxu0 0
      %1743 = vmatpush2.bf16.msra.mxu0 0
      %1744 = vmatprep.subr.bf16.mxu0 0
      %1745 = vmatpush2.bf16.msra.mxu0 0
      %1746 = vmatprep.subr.bf16.mxu0 0
      %1747 = vmatpush2.bf16.msra.mxu0 0
      %1748 = vmatprep.subr.bf16.mxu0 0
      %1749 = vmatpush2.bf16.msra.mxu0 0
      %1750 = vmatprep.subr.bf16.mxu0 0
      %1751 = vmatpush2.bf16.msra.mxu0 0
      %1752 = vmatprep.subr.bf16.mxu0 0
      %1753 = vmatpush2.bf16.msra.mxu0 0
      %1754 = vmatprep.mubr.bf16.mxu0 0
      %1755 = vmatmul.mubr.bf16.gmra.mxu0 %v1397
      %v1756 = vpop.f32.mrf.mxu0
      %v1757 = vadd.f32 0.0, %v1756
      %v1758 = vpop.f32.mrf.mxu0
      %v1759 = vpop.f32.mrf.mxu0
      %v1760 = vpop.f32.mrf.mxu0
      %1761 = vdwg.mxu0
      %v1762 = vsub.f32 %v747, %v1115
      %v1763 = vsub.f32 %v793, %v1161
      %v1764 = vsub.f32 %v839, %v1207
      %v1765 = vsub.f32 %v885, %v1253
      %v1766 = vsub.f32 %v931, %v1299
      %v1767 = vsub.f32 %v977, %v1345
      %v1768 = vsub.f32 %v1023, %v1391
      %v1769 = vsub.f32 %v1069, %v1437
      %1770 = vmatprep.subr.bf16.mxu0 0
      %1771 = vmatpush1.bf16.msra.mxu0 0
      %1772 = vmatprep.subr.bf16.mxu0 0
      %1773 = vmatpush1.bf16.msra.mxu0 0
      %1774 = vmatprep.subr.bf16.mxu0 0
      %1775 = vmatpush1.bf16.msra.mxu0 0
      %1776 = vmatprep.subr.bf16.mxu0 0
      %1777 = vmatpush1.bf16.msra.mxu0 0
      %1778 = vmatprep.subr.bf16.mxu0 0
      %1779 = vmatpush1.bf16.msra.mxu0 0
      %1780 = vmatprep.subr.bf16.mxu0 0
      %1781 = vmatpush1.bf16.msra.mxu0 0
      %1782 = vmatprep.subr.bf16.mxu0 0
      %1783 = vmatpush1.bf16.msra.mxu0 0
      %1784 = vmatprep.subr.bf16.mxu0 0
      %1785 = vmatpush1.bf16.msra.mxu0 %v1078
      %1786 = vmatprep.subr.bf16.mxu0 0
      %1787 = vmatpush2.bf16.msra.mxu0 0
      %1788 = vmatprep.subr.bf16.mxu0 0
      %1789 = vmatpush2.bf16.msra.mxu0 0
      %1790 = vmatprep.subr.bf16.mxu0 0
      %1791 = vmatpush2.bf16.msra.mxu0 0
      %1792 = vmatprep.subr.bf16.mxu0 0
      %1793 = vmatpush2.bf16.msra.mxu0 0
      %1794 = vmatprep.subr.bf16.mxu0 0
      %1795 = vmatpush2.bf16.msra.mxu0 0
      %1796 = vmatprep.subr.bf16.mxu0 0
      %1797 = vmatpush2.bf16.msra.mxu0 0
      %1798 = vmatprep.subr.bf16.mxu0 0
      %1799 = vmatpush2.bf16.msra.mxu0 0
      %1800 = vmatprep.subr.bf16.mxu0 0
      %1801 = vmatpush2.bf16.msra.mxu0 0
      %1802 = vmatprep.mubr.bf16.mxu0 0
      %1803 = vmatmul.mubr.bf16.gmra.mxu0 %v706
      %v1804 = vpop.f32.mrf.mxu0
      %v1805 = vadd.f32 %v1477, %v1804
      %v1806 = vpop.f32.mrf.mxu0
      %v1807 = vpop.f32.mrf.mxu0
      %v1808 = vpop.f32.mrf.mxu0
      %1809 = vdwg.mxu0
      %1810 = vmatprep.subr.bf16.mxu0 0
      %1811 = vmatpush1.bf16.msra.mxu0 0
      %1812 = vmatprep.subr.bf16.mxu0 0
      %1813 = vmatpush1.bf16.msra.mxu0 0
      %1814 = vmatprep.subr.bf16.mxu0 0
      %1815 = vmatpush1.bf16.msra.mxu0 0
      %1816 = vmatprep.subr.bf16.mxu0 0
      %1817 = vmatpush1.bf16.msra.mxu0 0
      %1818 = vmatprep.subr.bf16.mxu0 0
      %1819 = vmatpush1.bf16.msra.mxu0 0
      %1820 = vmatprep.subr.bf16.mxu0 0
      %1821 = vmatpush1.bf16.msra.mxu0 0
      %1822 = vmatprep.subr.bf16.mxu0 0
      %1823 = vmatpush1.bf16.msra.mxu0 0
      %1824 = vmatprep.subr.bf16.mxu0 0
      %1825 = vmatpush1.bf16.msra.mxu0 %v1124
      %1826 = vmatprep.subr.bf16.mxu0 0
      %1827 = vmatpush2.bf16.msra.mxu0 0
      %1828 = vmatprep.subr.bf16.mxu0 0
      %1829 = vmatpush2.bf16.msra.mxu0 0
      %1830 = vmatprep.subr.bf16.mxu0 0
      %1831 = vmatpush2.bf16.msra.mxu0 0
      %1832 = vmatprep.subr.bf16.mxu0 0
      %1833 = vmatpush2.bf16.msra.mxu0 0
      %1834 = vmatprep.subr.bf16.mxu0 0
      %1835 = vmatpush2.bf16.msra.mxu0 0
      %1836 = vmatprep.subr.bf16.mxu0 0
      %1837 = vmatpush2.bf16.msra.mxu0 0
      %1838 = vmatprep.subr.bf16.mxu0 0
      %1839 = vmatpush2.bf16.msra.mxu0 0
      %1840 = vmatprep.subr.bf16.mxu0 0
      %1841 = vmatpush2.bf16.msra.mxu0 0
      %1842 = vmatprep.mubr.bf16.mxu0 0
      %1843 = vmatmul.mubr.bf16.gmra.mxu0 %v753
      %v1844 = vpop.f32.mrf.mxu0
      %v1845 = vadd.f32 %v1517, %v1844
      %v1846 = vpop.f32.mrf.mxu0
      %v1847 = vpop.f32.mrf.mxu0
      %v1848 = vpop.f32.mrf.mxu0
      %1849 = vdwg.mxu0
      %1850 = vmatprep.subr.bf16.mxu0 0
      %1851 = vmatpush1.bf16.msra.mxu0 0
      %1852 = vmatprep.subr.bf16.mxu0 0
      %1853 = vmatpush1.bf16.msra.mxu0 0
      %1854 = vmatprep.subr.bf16.mxu0 0
      %1855 = vmatpush1.bf16.msra.mxu0 0
      %1856 = vmatprep.subr.bf16.mxu0 0
      %1857 = vmatpush1.bf16.msra.mxu0 0
      %1858 = vmatprep.subr.bf16.mxu0 0
      %1859 = vmatpush1.bf16.msra.mxu0 0
      %1860 = vmatprep.subr.bf16.mxu0 0
      %1861 = vmatpush1.bf16.msra.mxu0 0
      %1862 = vmatprep.subr.bf16.mxu0 0
      %1863 = vmatpush1.bf16.msra.mxu0 0
      %1864 = vmatprep.subr.bf16.mxu0 0
      %1865 = vmatpush1.bf16.msra.mxu0 %v1170
      %1866 = vmatprep.subr.bf16.mxu0 0
      %1867 = vmatpush2.bf16.msra.mxu0 0
      %1868 = vmatprep.subr.bf16.mxu0 0
      %1869 = vmatpush2.bf16.msra.mxu0 0
      %1870 = vmatprep.subr.bf16.mxu0 0
      %1871 = vmatpush2.bf16.msra.mxu0 0
      %1872 = vmatprep.subr.bf16.mxu0 0
      %1873 = vmatpush2.bf16.msra.mxu0 0
      %1874 = vmatprep.subr.bf16.mxu0 0
      %1875 = vmatpush2.bf16.msra.mxu0 0
      %1876 = vmatprep.subr.bf16.mxu0 0
      %1877 = vmatpush2.bf16.msra.mxu0 0
      %1878 = vmatprep.subr.bf16.mxu0 0
      %1879 = vmatpush2.bf16.msra.mxu0 0
      %1880 = vmatprep.subr.bf16.mxu0 0
      %1881 = vmatpush2.bf16.msra.mxu0 0
      %1882 = vmatprep.mubr.bf16.mxu0 0
      %1883 = vmatmul.mubr.bf16.gmra.mxu0 %v799
      %v1884 = vpop.f32.mrf.mxu0
      %v1885 = vadd.f32 %v1557, %v1884
      %v1886 = vpop.f32.mrf.mxu0
      %v1887 = vpop.f32.mrf.mxu0
      %v1888 = vpop.f32.mrf.mxu0
      %1889 = vdwg.mxu0
      %1890 = vmatprep.subr.bf16.mxu0 0
      %1891 = vmatpush1.bf16.msra.mxu0 0
      %1892 = vmatprep.subr.bf16.mxu0 0
      %1893 = vmatpush1.bf16.msra.mxu0 0
      %1894 = vmatprep.subr.bf16.mxu0 0
      %1895 = vmatpush1.bf16.msra.mxu0 0
      %1896 = vmatprep.subr.bf16.mxu0 0
      %1897 = vmatpush1.bf16.msra.mxu0 0
      %1898 = vmatprep.subr.bf16.mxu0 0
      %1899 = vmatpush1.bf16.msra.mxu0 0
      %1900 = vmatprep.subr.bf16.mxu0 0
      %1901 = vmatpush1.bf16.msra.mxu0 0
      %1902 = vmatprep.subr.bf16.mxu0 0
      %1903 = vmatpush1.bf16.msra.mxu0 0
      %1904 = vmatprep.subr.bf16.mxu0 0
      %1905 = vmatpush1.bf16.msra.mxu0 %v1216
      %1906 = vmatprep.subr.bf16.mxu0 0
      %1907 = vmatpush2.bf16.msra.mxu0 0
      %1908 = vmatprep.subr.bf16.mxu0 0
      %1909 = vmatpush2.bf16.msra.mxu0 0
      %1910 = vmatprep.subr.bf16.mxu0 0
      %1911 = vmatpush2.bf16.msra.mxu0 0
      %1912 = vmatprep.subr.bf16.mxu0 0
      %1913 = vmatpush2.bf16.msra.mxu0 0
      %1914 = vmatprep.subr.bf16.mxu0 0
      %1915 = vmatpush2.bf16.msra.mxu0 0
      %1916 = vmatprep.subr.bf16.mxu0 0
      %1917 = vmatpush2.bf16.msra.mxu0 0
      %1918 = vmatprep.subr.bf16.mxu0 0
      %1919 = vmatpush2.bf16.msra.mxu0 0
      %1920 = vmatprep.subr.bf16.mxu0 0
      %1921 = vmatpush2.bf16.msra.mxu0 0
      %1922 = vmatprep.mubr.bf16.mxu0 0
      %1923 = vmatmul.mubr.bf16.gmra.mxu0 %v845
      %v1924 = vpop.f32.mrf.mxu0
      %v1925 = vadd.f32 %v1597, %v1924
      %v1926 = vpop.f32.mrf.mxu0
      %v1927 = vpop.f32.mrf.mxu0
      %v1928 = vpop.f32.mrf.mxu0
      %1929 = vdwg.mxu0
      %1930 = vmatprep.subr.bf16.mxu0 0
      %1931 = vmatpush1.bf16.msra.mxu0 0
      %1932 = vmatprep.subr.bf16.mxu0 0
      %1933 = vmatpush1.bf16.msra.mxu0 0
      %1934 = vmatprep.subr.bf16.mxu0 0
      %1935 = vmatpush1.bf16.msra.mxu0 0
      %1936 = vmatprep.subr.bf16.mxu0 0
      %1937 = vmatpush1.bf16.msra.mxu0 0
      %1938 = vmatprep.subr.bf16.mxu0 0
      %1939 = vmatpush1.bf16.msra.mxu0 0
      %1940 = vmatprep.subr.bf16.mxu0 0
      %1941 = vmatpush1.bf16.msra.mxu0 0
      %1942 = vmatprep.subr.bf16.mxu0 0
      %1943 = vmatpush1.bf16.msra.mxu0 0
      %1944 = vmatprep.subr.bf16.mxu0 0
      %1945 = vmatpush1.bf16.msra.mxu0 %v1262
      %1946 = vmatprep.subr.bf16.mxu0 0
      %1947 = vmatpush2.bf16.msra.mxu0 0
      %1948 = vmatprep.subr.bf16.mxu0 0
      %1949 = vmatpush2.bf16.msra.mxu0 0
      %1950 = vmatprep.subr.bf16.mxu0 0
      %1951 = vmatpush2.bf16.msra.mxu0 0
      %1952 = vmatprep.subr.bf16.mxu0 0
      %1953 = vmatpush2.bf16.msra.mxu0 0
      %1954 = vmatprep.subr.bf16.mxu0 0
      %1955 = vmatpush2.bf16.msra.mxu0 0
      %1956 = vmatprep.subr.bf16.mxu0 0
      %1957 = vmatpush2.bf16.msra.mxu0 0
      %1958 = vmatprep.subr.bf16.mxu0 0
      %1959 = vmatpush2.bf16.msra.mxu0 0
      %1960 = vmatprep.subr.bf16.mxu0 0
      %1961 = vmatpush2.bf16.msra.mxu0 0
      %1962 = vmatprep.mubr.bf16.mxu0 0
      %1963 = vmatmul.mubr.bf16.gmra.mxu0 %v891
      %v1964 = vpop.f32.mrf.mxu0
      %v1965 = vadd.f32 %v1637, %v1964
      %v1966 = vpop.f32.mrf.mxu0
      %v1967 = vpop.f32.mrf.mxu0
      %v1968 = vpop.f32.mrf.mxu0
      %1969 = vdwg.mxu0
      %1970 = vmatprep.subr.bf16.mxu0 0
      %1971 = vmatpush1.bf16.msra.mxu0 0
      %1972 = vmatprep.subr.bf16.mxu0 0
      %1973 = vmatpush1.bf16.msra.mxu0 0
      %1974 = vmatprep.subr.bf16.mxu0 0
      %1975 = vmatpush1.bf16.msra.mxu0 0
      %1976 = vmatprep.subr.bf16.mxu0 0
      %1977 = vmatpush1.bf16.msra.mxu0 0
      %1978 = vmatprep.subr.bf16.mxu0 0
      %1979 = vmatpush1.bf16.msra.mxu0 0
      %1980 = vmatprep.subr.bf16.mxu0 0
      %1981 = vmatpush1.bf16.msra.mxu0 0
      %1982 = vmatprep.subr.bf16.mxu0 0
      %1983 = vmatpush1.bf16.msra.mxu0 0
      %1984 = vmatprep.subr.bf16.mxu0 0
      %1985 = vmatpush1.bf16.msra.mxu0 %v1308
      %1986 = vmatprep.subr.bf16.mxu0 0
      %1987 = vmatpush2.bf16.msra.mxu0 0
      %1988 = vmatprep.subr.bf16.mxu0 0
      %1989 = vmatpush2.bf16.msra.mxu0 0
      %1990 = vmatprep.subr.bf16.mxu0 0
      %1991 = vmatpush2.bf16.msra.mxu0 0
      %1992 = vmatprep.subr.bf16.mxu0 0
      %1993 = vmatpush2.bf16.msra.mxu0 0
      %1994 = vmatprep.subr.bf16.mxu0 0
      %1995 = vmatpush2.bf16.msra.mxu0 0
      %1996 = vmatprep.subr.bf16.mxu0 0
      %1997 = vmatpush2.bf16.msra.mxu0 0
      %1998 = vmatprep.subr.bf16.mxu0 0
      %1999 = vmatpush2.bf16.msra.mxu0 0
      %2000 = vmatprep.subr.bf16.mxu0 0
      %2001 = vmatpush2.bf16.msra.mxu0 0
      %2002 = vmatprep.mubr.bf16.mxu0 0
      %2003 = vmatmul.mubr.bf16.gmra.mxu0 %v937
      %v2004 = vpop.f32.mrf.mxu0
      %v2005 = vadd.f32 %v1677, %v2004
      %v2006 = vpop.f32.mrf.mxu0
      %v2007 = vpop.f32.mrf.mxu0
      %v2008 = vpop.f32.mrf.mxu0
      %2009 = vdwg.mxu0
      %2010 = vmatprep.subr.bf16.mxu0 0
      %2011 = vmatpush1.bf16.msra.mxu0 0
      %2012 = vmatprep.subr.bf16.mxu0 0
      %2013 = vmatpush1.bf16.msra.mxu0 0
      %2014 = vmatprep.subr.bf16.mxu0 0
      %2015 = vmatpush1.bf16.msra.mxu0 0
      %2016 = vmatprep.subr.bf16.mxu0 0
      %2017 = vmatpush1.bf16.msra.mxu0 0
      %2018 = vmatprep.subr.bf16.mxu0 0
      %2019 = vmatpush1.bf16.msra.mxu0 0
      %2020 = vmatprep.subr.bf16.mxu0 0
      %2021 = vmatpush1.bf16.msra.mxu0 0
      %2022 = vmatprep.subr.bf16.mxu0 0
      %2023 = vmatpush1.bf16.msra.mxu0 0
      %2024 = vmatprep.subr.bf16.mxu0 0
      %2025 = vmatpush1.bf16.msra.mxu0 %v1354
      %2026 = vmatprep.subr.bf16.mxu0 0
      %2027 = vmatpush2.bf16.msra.mxu0 0
      %2028 = vmatprep.subr.bf16.mxu0 0
      %2029 = vmatpush2.bf16.msra.mxu0 0
      %2030 = vmatprep.subr.bf16.mxu0 0
      %2031 = vmatpush2.bf16.msra.mxu0 0
      %2032 = vmatprep.subr.bf16.mxu0 0
      %2033 = vmatpush2.bf16.msra.mxu0 0
      %2034 = vmatprep.subr.bf16.mxu0 0
      %2035 = vmatpush2.bf16.msra.mxu0 0
      %2036 = vmatprep.subr.bf16.mxu0 0
      %2037 = vmatpush2.bf16.msra.mxu0 0
      %2038 = vmatprep.subr.bf16.mxu0 0
      %2039 = vmatpush2.bf16.msra.mxu0 0
      %2040 = vmatprep.subr.bf16.mxu0 0
      %2041 = vmatpush2.bf16.msra.mxu0 0
      %2042 = vmatprep.mubr.bf16.mxu0 0
      %2043 = vmatmul.mubr.bf16.gmra.mxu0 %v983
      %v2044 = vpop.f32.mrf.mxu0
      %v2045 = vadd.f32 %v1717, %v2044
      %v2046 = vpop.f32.mrf.mxu0
      %v2047 = vpop.f32.mrf.mxu0
      %v2048 = vpop.f32.mrf.mxu0
      %2049 = vdwg.mxu0
      %2050 = vmatprep.subr.bf16.mxu0 0
      %2051 = vmatpush1.bf16.msra.mxu0 0
      %2052 = vmatprep.subr.bf16.mxu0 0
      %2053 = vmatpush1.bf16.msra.mxu0 0
      %2054 = vmatprep.subr.bf16.mxu0 0
      %2055 = vmatpush1.bf16.msra.mxu0 0
      %2056 = vmatprep.subr.bf16.mxu0 0
      %2057 = vmatpush1.bf16.msra.mxu0 0
      %2058 = vmatprep.subr.bf16.mxu0 0
      %2059 = vmatpush1.bf16.msra.mxu0 0
      %2060 = vmatprep.subr.bf16.mxu0 0
      %2061 = vmatpush1.bf16.msra.mxu0 0
      %2062 = vmatprep.subr.bf16.mxu0 0
      %2063 = vmatpush1.bf16.msra.mxu0 0
      %2064 = vmatprep.subr.bf16.mxu0 0
      %2065 = vmatpush1.bf16.msra.mxu0 %v1400
      %2066 = vmatprep.subr.bf16.mxu0 0
      %2067 = vmatpush2.bf16.msra.mxu0 0
      %2068 = vmatprep.subr.bf16.mxu0 0
      %2069 = vmatpush2.bf16.msra.mxu0 0
      %2070 = vmatprep.subr.bf16.mxu0 0
      %2071 = vmatpush2.bf16.msra.mxu0 0
      %2072 = vmatprep.subr.bf16.mxu0 0
      %2073 = vmatpush2.bf16.msra.mxu0 0
      %2074 = vmatprep.subr.bf16.mxu0 0
      %2075 = vmatpush2.bf16.msra.mxu0 0
      %2076 = vmatprep.subr.bf16.mxu0 0
      %2077 = vmatpush2.bf16.msra.mxu0 0
      %2078 = vmatprep.subr.bf16.mxu0 0
      %2079 = vmatpush2.bf16.msra.mxu0 0
      %2080 = vmatprep.subr.bf16.mxu0 0
      %2081 = vmatpush2.bf16.msra.mxu0 0
      %2082 = vmatprep.mubr.bf16.mxu0 0
      %2083 = vmatmul.mubr.bf16.gmra.mxu0 %v1029
      %v2084 = vpop.f32.mrf.mxu0
      %v2085 = vadd.f32 %v1757, %v2084
      %v2086 = vpop.f32.mrf.mxu0
      %v2087 = vpop.f32.mrf.mxu0
      %v2088 = vpop.f32.mrf.mxu0
      %2089 = vdwg.mxu0
      %v2090 = vlaneseq
      %v2091 = vshrl.u32 %v2090, 7
      %v2092 = vsub.s32 0, %v2091
      %v2093 = vrot.slane %v589, %v2092
      %2095 = vbcast.lane.b32.xlu0 %v2093, 256
      %v2096 = vpop.permute.xlu0 %2095
      %v2097 = vlaneseq
      %v2098 = vshrl.u32 %v2097, 7
      %v2099 = vsub.s32 1, %v2098
      %v2100 = vrot.slane %v589, %v2099
      %2102 = vbcast.lane.b32.xlu0 %v2100, 256
      %v2103 = vpop.permute.xlu0 %2102
      %v2104 = vlaneseq
      %v2105 = vshrl.u32 %v2104, 7
      %v2106 = vsub.s32 2, %v2105
      %v2107 = vrot.slane %v589, %v2106
      %2109 = vbcast.lane.b32.xlu0 %v2107, 256
      %v2110 = vpop.permute.xlu0 %2109
      %v2111 = vlaneseq
      %v2112 = vshrl.u32 %v2111, 7
      %v2113 = vsub.s32 3, %v2112
      %v2114 = vrot.slane %v589, %v2113
      %2116 = vbcast.lane.b32.xlu0 %v2114, 256
      %v2117 = vpop.permute.xlu0 %2116
      %v2118 = vlaneseq
      %v2119 = vshrl.u32 %v2118, 7
      %v2120 = vsub.s32 4, %v2119
      %v2121 = vrot.slane %v589, %v2120
      %2123 = vbcast.lane.b32.xlu0 %v2121, 256
      %v2124 = vpop.permute.xlu0 %2123
      %v2125 = vlaneseq
      %v2126 = vshrl.u32 %v2125, 7
      %v2127 = vsub.s32 5, %v2126
      %v2128 = vrot.slane %v589, %v2127
      %2130 = vbcast.lane.b32.xlu0 %v2128, 256
      %v2131 = vpop.permute.xlu0 %2130
      %v2132 = vlaneseq
      %v2133 = vshrl.u32 %v2132, 7
      %v2134 = vsub.s32 6, %v2133
      %v2135 = vrot.slane %v589, %v2134
      %2137 = vbcast.lane.b32.xlu0 %v2135, 256
      %v2138 = vpop.permute.xlu0 %2137
      %v2139 = vlaneseq
      %v2140 = vshrl.u32 %v2139, 7
      %v2141 = vsub.s32 7, %v2140
      %v2142 = vrot.slane %v589, %v2141
      %2144 = vbcast.lane.b32.xlu0 %v2142, 256
      %v2145 = vpop.permute.xlu0 %2144
      %v2146 = vlaneseq
      %v2147 = vshrl.u32 %v2146, 7
      %v2148 = vsub.s32 0, %v2147
      %v2149 = vrot.slane %v669, %v2148
      %2151 = vbcast.lane.b32.xlu0 %v2149, 256
      %v2152 = vpop.permute.xlu0 %2151
      %v2153 = vlaneseq
      %v2154 = vshrl.u32 %v2153, 7
      %v2155 = vsub.s32 1, %v2154
      %v2156 = vrot.slane %v669, %v2155
      %2158 = vbcast.lane.b32.xlu0 %v2156, 256
      %v2159 = vpop.permute.xlu0 %2158
      %v2160 = vlaneseq
      %v2161 = vshrl.u32 %v2160, 7
      %v2162 = vsub.s32 2, %v2161
      %v2163 = vrot.slane %v669, %v2162
      %2165 = vbcast.lane.b32.xlu0 %v2163, 256
      %v2166 = vpop.permute.xlu0 %2165
      %v2167 = vlaneseq
      %v2168 = vshrl.u32 %v2167, 7
      %v2169 = vsub.s32 3, %v2168
      %v2170 = vrot.slane %v669, %v2169
      %2172 = vbcast.lane.b32.xlu0 %v2170, 256
      %v2173 = vpop.permute.xlu0 %2172
      %v2174 = vlaneseq
      %v2175 = vshrl.u32 %v2174, 7
      %v2176 = vsub.s32 4, %v2175
      %v2177 = vrot.slane %v669, %v2176
      %2179 = vbcast.lane.b32.xlu0 %v2177, 256
      %v2180 = vpop.permute.xlu0 %2179
      %v2181 = vlaneseq
      %v2182 = vshrl.u32 %v2181, 7
      %v2183 = vsub.s32 5, %v2182
      %v2184 = vrot.slane %v669, %v2183
      %2186 = vbcast.lane.b32.xlu0 %v2184, 256
      %v2187 = vpop.permute.xlu0 %2186
      %v2188 = vlaneseq
      %v2189 = vshrl.u32 %v2188, 7
      %v2190 = vsub.s32 6, %v2189
      %v2191 = vrot.slane %v669, %v2190
      %2193 = vbcast.lane.b32.xlu0 %v2191, 256
      %v2194 = vpop.permute.xlu0 %2193
      %v2195 = vlaneseq
      %v2196 = vshrl.u32 %v2195, 7
      %v2197 = vsub.s32 7, %v2196
      %v2198 = vrot.slane %v669, %v2197
      %2200 = vbcast.lane.b32.xlu0 %v2198, 256
      %v2201 = vpop.permute.xlu0 %2200
      %v2202 = vmul.f32 %v1762, %v2096
      %v2203 = vmul.f32 %v1763, %v2103
      %v2204 = vmul.f32 %v1764, %v2110
      %v2205 = vmul.f32 %v1765, %v2117
      %v2206 = vmul.f32 %v1766, %v2124
      %v2207 = vmul.f32 %v1767, %v2131
      %v2208 = vmul.f32 %v1768, %v2138
      %v2209 = vmul.f32 %v1769, %v2145
      %v2210 = vmul.f32 %v1805, %v2152
      %v2211 = vmul.f32 %v1845, %v2159
      %v2212 = vmul.f32 %v1885, %v2166
      %v2213 = vmul.f32 %v1925, %v2173
      %v2214 = vmul.f32 %v1965, %v2180
      %v2215 = vmul.f32 %v2005, %v2187
      %v2216 = vmul.f32 %v2045, %v2194
      %v2217 = vmul.f32 %v2085, %v2201
      %v2218 = vsub.f32 %v2202, %v2210
      %v2219 = vsub.f32 %v2203, %v2211
      %v2220 = vsub.f32 %v2204, %v2212
      %v2221 = vsub.f32 %v2205, %v2213
      %v2222 = vsub.f32 %v2206, %v2214
      %v2223 = vsub.f32 %v2207, %v2215
      %v2224 = vsub.f32 %v2208, %v2216
      %v2225 = vsub.f32 %v2209, %v2217
      %vm2226 = vcmask 58368
      %2227 = vst.msk [vmem:[%s497] sm:$0x3] %vm2226, %v2218
      %2228 = vst.msk [vmem:[%s497 + $0x2] sm:$0x3] %vm2226, %v2219
      %2229 = vst.msk [vmem:[%s497 + $0x4] sm:$0x3] %vm2226, %v2220
      %2230 = vst.msk [vmem:[%s497 + $0x6] sm:$0x3] %vm2226, %v2221
      %2231 = vst.msk [vmem:[%s497 + $0x8] sm:$0x3] %vm2226, %v2222
      %2232 = vst.msk [vmem:[%s497 + $0xa] sm:$0x3] %vm2226, %v2223
      %2233 = vst.msk [vmem:[%s497 + $0xc] sm:$0x3] %vm2226, %v2224
      %2234 = vst.msk [vmem:[%s497 + $0xe] sm:$0x3] %vm2226, %v2225
      %v2235 = vmul.f32 %v1762, %v2152
      %v2236 = vmul.f32 %v1763, %v2159
      %v2237 = vmul.f32 %v1764, %v2166
      %v2238 = vmul.f32 %v1765, %v2173
      %v2239 = vmul.f32 %v1766, %v2180
      %v2240 = vmul.f32 %v1767, %v2187
      %v2241 = vmul.f32 %v1768, %v2194
      %v2242 = vmul.f32 %v1769, %v2201
      %v2243 = vmul.f32 %v1805, %v2096
      %v2244 = vmul.f32 %v1845, %v2103
      %v2245 = vmul.f32 %v1885, %v2110
      %v2246 = vmul.f32 %v1925, %v2117
      %v2247 = vmul.f32 %v1965, %v2124
      %v2248 = vmul.f32 %v2005, %v2131
      %v2249 = vmul.f32 %v2045, %v2138
      %v2250 = vmul.f32 %v2085, %v2145
      %v2251 = vadd.f32 %v2235, %v2243
      %v2252 = vadd.f32 %v2236, %v2244
      %v2253 = vadd.f32 %v2237, %v2245
      %v2254 = vadd.f32 %v2238, %v2246
      %v2255 = vadd.f32 %v2239, %v2247
      %v2256 = vadd.f32 %v2240, %v2248
      %v2257 = vadd.f32 %v2241, %v2249
      %v2258 = vadd.f32 %v2242, %v2250
      %2259 = vst.msk [vmem:[%s503] sm:$0x3] %vm2226, %v2251
      %2260 = vst.msk [vmem:[%s503 + $0x2] sm:$0x3] %vm2226, %v2252
      %2261 = vst.msk [vmem:[%s503 + $0x4] sm:$0x3] %vm2226, %v2253
      %2262 = vst.msk [vmem:[%s503 + $0x6] sm:$0x3] %vm2226, %v2254
      %2263 = vst.msk [vmem:[%s503 + $0x8] sm:$0x3] %vm2226, %v2255
      %2264 = vst.msk [vmem:[%s503 + $0xa] sm:$0x3] %vm2226, %v2256
      %2265 = vst.msk [vmem:[%s503 + $0xc] sm:$0x3] %vm2226, %v2257
      %2266 = vst.msk [vmem:[%s503 + $0xe] sm:$0x3] %vm2226, %v2258
      %s2267 = smul.u32 8, %s22
      %p2268 = scmp.lt.s32.totalorder %s2267, 15
      %s2269 = scalar_select %p2268, %s2267, 15
      %s2270 = smul.addr %s2269, 2
      %s2271 = scalar_lea.vmem %s9, %s2270
      %s2272 = smul.u32 8, %s22
      %p2273 = scmp.lt.s32.totalorder %s2272, 15
      %s2274 = scalar_select %p2273, %s2272, 15
      %s2275 = smul.addr %s2274, 2
      %s2276 = scalar_lea.vmem %s10, %s2275
      // Predicated region
      $region57: #{tpu_custom_call.1} parent=55 // pred_check
        %p2277 = pneg %p269
      $region58: #{tpu_custom_call.1} parent=55 // pred_check_branch
        %2279 = sbr.rel (%p2277) target = $region60
      $region59: #{tpu_custom_call.1} parent=55 // pred_region
        %s2280 = smul.u32 8, %s22
      $region60: #{tpu_custom_call.1} parent=55 // pred_fallthru
        _
      // Predicated region
      $region61: #{tpu_custom_call.1} parent=55 // pred_check
        %p2281 = pneg %p295
      $region62: #{tpu_custom_call.1} parent=55 // pred_check_branch
        %2283 = sbr.rel (%p2281) target = $region64
      $region63: #{tpu_custom_call.1} parent=55 // pred_region
        %s2284 = smul.u32 8, %s22
      $region64: #{tpu_custom_call.1} parent=55 // pred_fallthru
        _
    $region56: #{tpu_custom_call.1} parent=5 // pred_fallthru
      _
    %p2285 = scmp.le.s32.totalorder 2, %s17
    // Predicated region
    $region65: #{tpu_custom_call.1} parent=5 // pred_check
      %p2286 = pneg %p2285
    $region66: #{tpu_custom_call.1} parent=5 // pred_check_branch
      %2288 = sbr.rel (%p2286) target = $region68
    $region67: #{tpu_custom_call.1} parent=5 // pred_region
      %s2289 = ssub.s32 %s17, 2
      // Predicated region
      $region69: #{tpu_custom_call.1} parent=67 // pred_check
        %p2290 = pneg %p275
      $region70: #{tpu_custom_call.1} parent=67 // pred_check_branch
        %2292 = sbr.rel (%p2290) target = $region72
      $region71: #{tpu_custom_call.1} parent=67 // pred_region
        %s2293 = smul.u32 8, %s23
        %p2294 = scmp.lt.s32.totalorder %s2293, 15
        %s2295 = scalar_select %p2294, %s2293, 15
        %s2296 = smul.addr %s2295, 2
        %s2297 = scalar_lea.vmem %s9, %s2296
      $region72: #{tpu_custom_call.1} parent=67 // pred_fallthru
        _
      // Predicated region
      $region73: #{tpu_custom_call.1} parent=67 // pred_check
        %p2298 = pneg %p301
      $region74: #{tpu_custom_call.1} parent=67 // pred_check_branch
        %2300 = sbr.rel (%p2298) target = $region76
      $region75: #{tpu_custom_call.1} parent=67 // pred_region
        %s2301 = smul.u32 8, %s23
        %p2302 = scmp.lt.s32.totalorder %s2301, 15
        %s2303 = scalar_select %p2302, %s2301, 15
        %s2304 = smul.addr %s2303, 2
        %s2305 = scalar_lea.vmem %s10, %s2304
      $region76: #{tpu_custom_call.1} parent=67 // pred_fallthru
        _
    $region68: #{tpu_custom_call.1} parent=5 // pred_fallthru
      _
  $region6: #{tpu_custom_call.1} parent=0 // loop_footer
    %s21 = sadd.s32 1, %s17
  $region7: #{tpu_custom_call.1} parent=0 // loop_footer_branch
    %16 = sbr.rel target = $region3
  $region8: #{tpu_custom_call.1} parent=0 // loop_exit
    _

</llo_original>
